<compile_context>
chip_gen: v6e
topology: v6e:2x2x1
jax: 0.10.0
libtpu: 0.0.40
codegen_flags: <defaults>
</compile_context>

<pallas_src>
import functools

import numpy as np
import jax
import jax.numpy as jnp
from jax.experimental import pallas as pl
from jax.experimental.pallas import tpu as pltpu

# ----------------------------- configuration -------------------------------
X_DIM = 4          # state dim
U_DIM = 2          # control dim
R = 3              # relative degree (r >= 1)
HIDDEN = (32, 32)  # args.phi_nn_dimension = "32-32"; args.phi_nnl = "tanh-tanh-linear"
HID_PAD = 128      # pad hidden width to full lane width (exact w/ zero pad)
OUT_PAD = 128      # pad output lanes -> unmasked full-lane stores
PHI_CI_INIT_RANGE = 0.5
CI_MIN = 0.01
K0_MIN = 0.01


# ------------------------------ Pallas kernel ------------------------------
def neural_cbf_kernel(x_ref, w1_ref, b1_ref, w2_ref, b2_ref, w3row_ref, b3_ref,
                      m_ref, bias_ref, out_ref, *, phi_col):
    x = x_ref[...]                                                   # (tile, xd)

    # beta_net_value = net_reshape_h(x)   -- tanh / tanh / linear MLP
    h = jnp.tanh(jnp.dot(x, w1_ref[...],
                         preferred_element_type=jnp.float32) + b1_ref[...])
    h = jnp.tanh(jnp.dot(h, w2_ref[...],
                         preferred_element_type=jnp.float32) + b2_ref[...])
    # last Linear has out=1: cheaper as a row reduction than an MXU push.
    beta = jnp.sum(h * w3row_ref[...], axis=-1, keepdims=True) + b3_ref[0, 0]
    sp = jax.nn.softplus(beta)                                       # (tile, 1)

    # Folded affine chain: [result, phi*-without-softplus] = x @ M + bias
    affine = jnp.dot(x, m_ref[...],
                     preferred_element_type=jnp.float32) + bias_ref[...]
    # add softplus(beta) only to the phi* column (lane index phi_col)
    col = jax.lax.broadcasted_iota(jnp.int32, (1, affine.shape[-1]), 1)
    mask = (col == phi_col).astype(jnp.float32)                      # (1, OUT_PAD)
    out_ref[...] = affine + sp * mask                                # (tile, OUT_PAD)


def _round_up(n, m):
    return ((n + m - 1) // m) * m


def neural_cbf_forward(x, p, *, tile_bs=256):
    bs, xd = x.shape
    n_out = int(p["n_out"])
    out_pad = p["M"].shape[1]

    tile = _round_up(bs, 8) if bs <= tile_bs else tile_bs
    bs_pad = _round_up(bs, tile)
    if bs_pad != bs:
        x = jnp.pad(x, ((0, bs_pad - bs), (0, 0)))

    def resident(shape):  # full-array block, stays resident across the grid
        return pl.BlockSpec(shape, lambda i, _n=len(shape): (0,) * _n)

    out = pl.pallas_call(
        functools.partial(neural_cbf_kernel, phi_col=n_out - 1),
        out_shape=jax.ShapeDtypeStruct((bs_pad, out_pad), jnp.float32),
        grid=(bs_pad // tile,),
        in_specs=[
            pl.BlockSpec((tile, xd), lambda i: (i, 0)),              # x tile
            resident(p["w1"].shape), resident(p["b1"].shape),
            resident(p["w2"].shape), resident(p["b2"].shape),
            resident(p["w3row"].shape),
            pl.BlockSpec((1, 1), lambda i: (0, 0),
                         memory_space=pltpu.MemorySpace.SMEM),       # b3 scalar
            resident(p["M"].shape), resident(p["bias"].shape),
        ],
        out_specs=pl.BlockSpec((tile, out_pad), lambda i: (i, 0)),
        compiler_params=pltpu.CompilerParams(
            dimension_semantics=("parallel",)),
    )(x, p["w1"], p["b1"], p["w2"], p["b2"], p["w3row"], p["b3"],
      p["M"], p["bias"])

    return out[:bs, :n_out]


# ------------------------- deterministic parameters ------------------------
def make_params():
    key = jax.random.PRNGKey(0)
    ks = jax.random.split(key, 12)

    def unif(k, shape, scale):
        return np.asarray((jax.random.uniform(k, shape, jnp.float32) * 2.0 - 1.0)
                          * scale, np.float32)

    # nn.Parameter-like ci / k0 (torch.rand in [0,1) * init_range)
    ci_param = np.asarray(jax.random.uniform(ks[0], (R - 1, 1), jnp.float32)) \
        * PHI_CI_INIT_RANGE
    k0_param = np.asarray(jax.random.uniform(ks[1], (1, 1), jnp.float32)) \
        * PHI_CI_INIT_RANGE

    # MLP (Linear weights stored (in, out); biases (1, out))
    w1 = unif(ks[2], (X_DIM, HIDDEN[0]), 1.0 / np.sqrt(X_DIM))
    b1 = unif(ks[3], (1, HIDDEN[0]), 1.0 / np.sqrt(X_DIM))
    w2 = unif(ks[4], (HIDDEN[0], HIDDEN[1]), 1.0 / np.sqrt(HIDDEN[0]))
    b2 = unif(ks[5], (1, HIDDEN[1]), 1.0 / np.sqrt(HIDDEN[0]))
    w3 = unif(ks[6], (HIDDEN[1], 1), 1.0 / np.sqrt(HIDDEN[1]))
    b3 = unif(ks[7], (1, 1), 1.0 / np.sqrt(HIDDEN[1]))

    # Linear barrier h(x) = x @ w_h + b_h ; linear dynamics xdot = x @ A.T + u @ B.T
    w_h = unif(ks[8], (X_DIM, 1), 1.0)
    b_h = unif(ks[9], (1, 1), 1.0)
    A_dyn = unif(ks[10], (X_DIM, X_DIM), 0.5)
    _B_dyn = unif(ks[11], (X_DIM, U_DIM), 0.5)   # unused: forward uses u = 0

    # --- glue: ki_all recursion (tiny, parameter-only, host side) ---
    ci = ci_param[:, 0].astype(np.float64) + CI_MIN
    k0 = k0_param.astype(np.float64) + K0_MIN
    ki = np.array([1.0], np.float64)
    ki_all = np.zeros((R, R), np.float64)
    ki_all[0, :ki.size] = ki
    for i in range(R - 1):
        new_ki = np.zeros(ki.size + 1, np.float64)
        new_ki[:-1] += ki                 # A[:-1, 0] = ki,  binomial[0] = 1
        new_ki[1:] += ki * ci[i]          # A[1:, 1]  = ki,  binomial[1] = ci
        ki = new_ki
        ki_all[i + 1, :ki.size] = ki

    # --- glue: Lie-derivative matrix V (exactly mirrors the autograd chain) ---
    V_cols = [w_h.astype(np.float64)]
    At = A_dyn.astype(np.float64).T
    for _ in range(R - 1):
        V_cols.append(At @ V_cols[-1])
    V = np.concatenate(V_cols, axis=1)                      # (xd, r)
    hbias = np.zeros((1, R), np.float64)
    hbias[0, 0] = float(b_h[0, 0])

    # --- fold the post-MLP affine chain into a single matmul ---
    #   result            = x @ (V @ ki_all.T) + hbias @ ki_all.T
    #   phi* (w/o softplus) = result[:,-1] - result[:,0] + k0*(x @ w_h + b_h)
    W = V @ ki_all.T                                        # (xd, r)
    c = hbias @ ki_all.T                                    # (1, r)
    k0v = float(k0[0, 0])
    m_phi = W[:, -1:] - W[:, :1] + k0v * w_h.astype(np.float64)
    b_phi = c[:, -1:] - c[:, :1] + k0v * float(b_h[0, 0])
    M_full = np.concatenate([W, m_phi], axis=1)             # (xd, r+1)
    bias_full = np.concatenate([c, b_phi], axis=1)          # (1, r+1)

    def pad_to(a, shape):
        out = np.zeros(shape, np.float32)
        out[:a.shape[0], :a.shape[1]] = a
        return out

    params = dict(
        w1=jnp.asarray(pad_to(w1, (X_DIM, HID_PAD))),
        b1=jnp.asarray(pad_to(b1, (1, HID_PAD))),
        w2=jnp.asarray(pad_to(w2, (HID_PAD, HID_PAD))),
        b2=jnp.asarray(pad_to(b2, (1, HID_PAD))),
        w3row=jnp.asarray(pad_to(w3.T, (1, HID_PAD))),
        b3=jnp.asarray(b3),
        M=jnp.asarray(pad_to(M_full, (X_DIM, OUT_PAD))),
        bias=jnp.asarray(pad_to(bias_full, (1, OUT_PAD))),
        n_out=R + 1,
    )
    aux = dict(
        w1=jnp.asarray(w1), b1=jnp.asarray(b1), w2=jnp.asarray(w2),
        b2=jnp.asarray(b2), w3=jnp.asarray(w3), b3=jnp.asarray(b3),
        w_h=jnp.asarray(w_h), b_h=jnp.asarray(b_h), A_dyn=jnp.asarray(A_dyn),
        ki_all=jnp.asarray(ki_all.astype(np.float32)),
        k0=jnp.asarray(k0.astype(np.float32)),
    )
    return params, aux


# -------------------- pure-JAX reference (mirrors PyTorch) ------------------
def reference_forward(x, aux):
    w_h, b_h, A_dyn = aux["w_h"], aux["b_h"], aux["A_dyn"]
    ki_all, k0 = aux["ki_all"], aux["k0"]

    h_fn = lambda xx: xx @ w_h + b_h
    f_fn = lambda xx: xx @ A_dyn.T                     # u = 0

    # MLP
    h = jnp.tanh(x @ aux["w1"] + aux["b1"])
    h = jnp.tanh(h @ aux["w2"] + aux["b2"])
    beta = h @ aux["w3"] + aux["b3"]
    new_h = jax.nn.softplus(beta) + k0 * h_fn(x)

    # Lie-derivative chain via autodiff (mirrors torch.autograd.grad loop)
    funcs = [h_fn]
    for _ in range(R - 1):
        prev = funcs[-1]

        def next_fn(xx, _prev=prev):
            g = jax.grad(lambda z: jnp.sum(_prev(z)))(xx)
            return jnp.sum(g * f_fn(xx), axis=1, keepdims=True)

        funcs.append(next_fn)
    h_derivs = jnp.concatenate([fn(x) for fn in funcs], axis=1)      # (bs, r)

    result = h_derivs @ ki_all.T
    phi_star = result[:, -1:] - result[:, 0:1] + new_h
    return jnp.concatenate([result, phi_star], axis=1)


# ---------------------------------- main ------------------------------------
if __name__ == "__main__":
    params, aux = make_params()

    BS = 512   # batched: 2 grid tiles of 256 rows (amortizes launch overhead)
    x = jax.random.normal(jax.random.PRNGKey(42), (BS, X_DIM), jnp.float32)

    out = jax.block_until_ready(neural_cbf_forward(x, params))

    ref = reference_forward(x, aux)
    np.testing.assert_allclose(np.asarray(out), np.asarray(ref),
                               rtol=1e-4, atol=1e-4)
    print("KERNEL_OK")
</pallas_src>

<mosaic_0001>
module attributes {stable_mosaic.version = 11 : i64} {
  func.func @neural_cbf_kernel(%arg0: i32, %arg1: memref<256x4xf32, #tpu.memory_space<vmem>>, %arg2: memref<4x128xf32, #tpu.memory_space<vmem>>, %arg3: memref<1x128xf32, #tpu.memory_space<vmem>>, %arg4: memref<128x128xf32, #tpu.memory_space<vmem>>, %arg5: memref<1x128xf32, #tpu.memory_space<vmem>>, %arg6: memref<1x128xf32, #tpu.memory_space<vmem>>, %arg7: memref<1x1xf32, #tpu.memory_space<smem>>, %arg8: memref<4x128xf32, #tpu.memory_space<vmem>>, %arg9: memref<1x128xf32, #tpu.memory_space<vmem>>, %arg10: memref<256x128xf32, #tpu.memory_space<vmem>>) attributes {dimension_semantics = [#tpu.dimension_semantics<parallel>], iteration_bounds = array<i64: 2>, scalar_prefetch = 0 : i64, scratch_operands = 0 : i64, tpu.core_type = #tpu.core_type<tc>, window_params = [{transform_indices = @transform_0, window_bounds = array<i64: 256, 4>}, {pipeline_mode = #tpu.pipeline_mode<synchronous>, transform_indices = @transform_1, window_bounds = array<i64: 4, 128>}, {pipeline_mode = #tpu.pipeline_mode<synchronous>, transform_indices = @transform_2, window_bounds = array<i64: 1, 128>}, {pipeline_mode = #tpu.pipeline_mode<synchronous>, transform_indices = @transform_3, window_bounds = array<i64: 128, 128>}, {pipeline_mode = #tpu.pipeline_mode<synchronous>, transform_indices = @transform_4, window_bounds = array<i64: 1, 128>}, {pipeline_mode = #tpu.pipeline_mode<synchronous>, transform_indices = @transform_5, window_bounds = array<i64: 1, 128>}, {transform_indices = @transform_6, window_bounds = array<i64: 1, 1>}, {pipeline_mode = #tpu.pipeline_mode<synchronous>, transform_indices = @transform_7, window_bounds = array<i64: 4, 128>}, {pipeline_mode = #tpu.pipeline_mode<synchronous>, transform_indices = @transform_8, window_bounds = array<i64: 1, 128>}, {transform_indices = @transform_9, window_bounds = array<i64: 256, 128>}]} {
    %c0 = arith.constant 0 : index
    %c0_0 = arith.constant 0 : index
    %0 = vector.load %arg1[%c0, %c0_0] : memref<256x4xf32, #tpu.memory_space<vmem>>, vector<256x4xf32>
    %c0_1 = arith.constant 0 : index
    %c0_2 = arith.constant 0 : index
    %1 = vector.load %arg2[%c0_1, %c0_2] : memref<4x128xf32, #tpu.memory_space<vmem>>, vector<4x128xf32>
    %cst = arith.constant dense<0.000000e+00> : vector<256x128xf32>
    %2 = tpu.matmul %0, %1, %cst {dimension_numbers = #tpu.dot_dimension_numbers<[1], [0], [0], [1], [0, 0, 1, 1], [], []>} : vector<256x4xf32>, vector<4x128xf32>, vector<256x128xf32> -> vector<256x128xf32>
    %c0_3 = arith.constant 0 : index
    %c0_4 = arith.constant 0 : index
    %3 = vector.load %arg3[%c0_3, %c0_4] : memref<1x128xf32, #tpu.memory_space<vmem>>, vector<1x128xf32>
    %4 = vector.broadcast %3 : vector<1x128xf32> to vector<256x128xf32>
    %5 = arith.addf %2, %4 : vector<256x128xf32>
    %6 = math.tanh %5 : vector<256x128xf32>
    %c0_5 = arith.constant 0 : index
    %c0_6 = arith.constant 0 : index
    %7 = vector.load %arg4[%c0_5, %c0_6] : memref<128x128xf32, #tpu.memory_space<vmem>>, vector<128x128xf32>
    %cst_7 = arith.constant dense<0.000000e+00> : vector<256x128xf32>
    %8 = tpu.matmul %6, %7, %cst_7 {dimension_numbers = #tpu.dot_dimension_numbers<[1], [0], [0], [1], [0, 0, 1, 1], [], []>} : vector<256x128xf32>, vector<128x128xf32>, vector<256x128xf32> -> vector<256x128xf32>
    %c0_8 = arith.constant 0 : index
    %c0_9 = arith.constant 0 : index
    %9 = vector.load %arg5[%c0_8, %c0_9] : memref<1x128xf32, #tpu.memory_space<vmem>>, vector<1x128xf32>
    %10 = vector.broadcast %9 : vector<1x128xf32> to vector<256x128xf32>
    %11 = arith.addf %8, %10 : vector<256x128xf32>
    %12 = math.tanh %11 : vector<256x128xf32>
    %c0_10 = arith.constant 0 : index
    %c0_11 = arith.constant 0 : index
    %13 = vector.load %arg6[%c0_10, %c0_11] : memref<1x128xf32, #tpu.memory_space<vmem>>, vector<1x128xf32>
    %14 = vector.broadcast %13 : vector<1x128xf32> to vector<256x128xf32>
    %15 = arith.mulf %12, %14 : vector<256x128xf32>
    %cst_12 = arith.constant dense<0.000000e+00> : vector<256xf32>
    %16 = vector.multi_reduction <add>, %15, %cst_12 [1] : vector<256x128xf32> to vector<256xf32>
    %17 = vector.shape_cast %16 : vector<256xf32> to vector<256x1xf32>
    %c0_13 = arith.constant 0 : index
    %c0_14 = arith.constant 0 : index
    %18 = memref.load %arg7[%c0_13, %c0_14] : memref<1x1xf32, #tpu.memory_space<smem>>
    %19 = vector.broadcast %18 : f32 to vector<256x1xf32>
    %20 = arith.addf %17, %19 : vector<256x1xf32>
    %cst_15 = arith.constant 0.000000e+00 : f32
    %21 = vector.broadcast %cst_15 : f32 to vector<256x1xf32>
    %22 = arith.maximumf %20, %21 : vector<256x1xf32>
    %23 = vector.broadcast %cst_15 : f32 to vector<256x1xf32>
    %24 = arith.subf %20, %23 : vector<256x1xf32>
    %25 = arith.cmpf one, %24, %24 : vector<256x1xf32>
    %26 = vector.broadcast %cst_15 : f32 to vector<256x1xf32>
    %27 = arith.addf %20, %26 : vector<256x1xf32>
    %28 = math.absf %24 : vector<256x1xf32>
    %cst_16 = arith.constant 0.000000e+00 : f32
    %29 = vector.broadcast %cst_16 : f32 to vector<256x1xf32>
    %30 = arith.subf %29, %28 : vector<256x1xf32>
    %31 = math.exp %30 : vector<256x1xf32>
    %32 = math.log1p %31 : vector<256x1xf32>
    %33 = arith.addf %22, %32 : vector<256x1xf32>
    %34 = arith.select %25, %27, %33 : vector<256x1xi1>, vector<256x1xf32>
    %c0_17 = arith.constant 0 : index
    %c0_18 = arith.constant 0 : index
    %35 = vector.load %arg8[%c0_17, %c0_18] : memref<4x128xf32, #tpu.memory_space<vmem>>, vector<4x128xf32>
    %cst_19 = arith.constant dense<0.000000e+00> : vector<256x128xf32>
    %36 = tpu.matmul %0, %35, %cst_19 {dimension_numbers = #tpu.dot_dimension_numbers<[1], [0], [0], [1], [0, 0, 1, 1], [], []>} : vector<256x4xf32>, vector<4x128xf32>, vector<256x128xf32> -> vector<256x128xf32>
    %c0_20 = arith.constant 0 : index
    %c0_21 = arith.constant 0 : index
    %37 = vector.load %arg9[%c0_20, %c0_21] : memref<1x128xf32, #tpu.memory_space<vmem>>, vector<1x128xf32>
    %38 = vector.broadcast %37 : vector<1x128xf32> to vector<256x128xf32>
    %39 = arith.addf %36, %38 : vector<256x128xf32>
    %40 = tpu.iota {dimensions = array<i32: 1>} : vector<1x128xi32>
    %c3_i32 = arith.constant 3 : i32
    %41 = vector.broadcast %c3_i32 : i32 to vector<1x128xi32>
    %42 = arith.cmpi eq, %40, %41 : vector<1x128xi32>
    %43 = arith.extui %42 : vector<1x128xi1> to vector<1x128xi32>
    %44 = arith.sitofp %43 : vector<1x128xi32> to vector<1x128xf32>
    %45 = vector.broadcast %34 : vector<256x1xf32> to vector<256x128xf32>
    %46 = vector.broadcast %44 : vector<1x128xf32> to vector<256x128xf32>
    %47 = arith.mulf %45, %46 : vector<256x128xf32>
    %48 = arith.addf %39, %47 : vector<256x128xf32>
    %c0_22 = arith.constant 0 : index
    %c0_23 = arith.constant 0 : index
    %49 = vector.load %arg10[%c0_22, %c0_23] : memref<256x128xf32, #tpu.memory_space<vmem>>, vector<256x128xf32>
    tpu.vector_store %arg10[%c0_22, %c0_23], %48 {strides = array<i32>} : memref<256x128xf32, #tpu.memory_space<vmem>>, vector<256x128xf32>,
    return
  }
  func.func @transform_0(%arg0: i32) -> (i32, i32) {
    %c0_i32 = arith.constant 0 : i32
    %c0_i32_0 = arith.constant 0 : i32
    return %arg0, %c0_i32 : i32, i32
  }
  func.func @transform_1(%arg0: i32) -> (i32, i32) {
    %c0_i32 = arith.constant 0 : i32
    %c0_i32_0 = arith.constant 0 : i32
    %c0_i32_1 = arith.constant 0 : i32
    return %c0_i32, %c0_i32_0 : i32, i32
  }
  func.func @transform_2(%arg0: i32) -> (i32, i32) {
    %c0_i32 = arith.constant 0 : i32
    %c0_i32_0 = arith.constant 0 : i32
    %c0_i32_1 = arith.constant 0 : i32
    return %c0_i32, %c0_i32_0 : i32, i32
  }
  func.func @transform_3(%arg0: i32) -> (i32, i32) {
    %c0_i32 = arith.constant 0 : i32
    %c0_i32_0 = arith.constant 0 : i32
    %c0_i32_1 = arith.constant 0 : i32
    return %c0_i32, %c0_i32_0 : i32, i32
  }
  func.func @transform_4(%arg0: i32) -> (i32, i32) {
    %c0_i32 = arith.constant 0 : i32
    %c0_i32_0 = arith.constant 0 : i32
    %c0_i32_1 = arith.constant 0 : i32
    return %c0_i32, %c0_i32_0 : i32, i32
  }
  func.func @transform_5(%arg0: i32) -> (i32, i32) {
    %c0_i32 = arith.constant 0 : i32
    %c0_i32_0 = arith.constant 0 : i32
    %c0_i32_1 = arith.constant 0 : i32
    return %c0_i32, %c0_i32_0 : i32, i32
  }
  func.func @transform_6(%arg0: i32) -> (i32, i32) {
    %c0_i32 = arith.constant 0 : i32
    %c0_i32_0 = arith.constant 0 : i32
    %c0_i32_1 = arith.constant 0 : i32
    return %c0_i32, %c0_i32_0 : i32, i32
  }
  func.func @transform_7(%arg0: i32) -> (i32, i32) {
    %c0_i32 = arith.constant 0 : i32
    %c0_i32_0 = arith.constant 0 : i32
    %c0_i32_1 = arith.constant 0 : i32
    return %c0_i32, %c0_i32_0 : i32, i32
  }
  func.func @transform_8(%arg0: i32) -> (i32, i32) {
    %c0_i32 = arith.constant 0 : i32
    %c0_i32_0 = arith.constant 0 : i32
    %c0_i32_1 = arith.constant 0 : i32
    return %c0_i32, %c0_i32_0 : i32, i32
  }
  func.func @transform_9(%arg0: i32) -> (i32, i32) {
    %c0_i32 = arith.constant 0 : i32
    %c0_i32_0 = arith.constant 0 : i32
    return %arg0, %c0_i32 : i32, i32
  }
}

</mosaic_0001>

<llo_original>
// kernel: tpu_custom_call.1
$region0: #{tpu_custom_call.1}
  #allocation0 [shape = 'u32[]', space=smem, size = 0x4, offset = 0x4, fixed_abs, tag = 'smem constant byte address 0x4 - core index']
  #allocation1 [shape = 'u32[144,128]{1,0:T(1,128)}', space=vmem, size = 0x12000, scoped, tag = 'internal scratch']
  #allocation2 [shape = 'f32[1,1]{1,0:T(1,128)S(6)}', space=smem, size = 0x200, scoped, tag = 'scoped memory for tpu_custom_call.1']
  %s0 = inlined_call_operand.vmem [shape: f32[512,4], index: 0, kind: input, shape index: {}]
  %s1 = inlined_call_operand.vmem [shape: f32[4,128], index: 1, kind: input, shape index: {}]
  %s2 = inlined_call_operand.vmem [shape: f32[1,128], index: 2, kind: input, shape index: {}]
  %s3 = inlined_call_operand.vmem [shape: f32[128,128], index: 3, kind: input, shape index: {}]
  %s4 = inlined_call_operand.vmem [shape: f32[1,128], index: 4, kind: input, shape index: {}]
  %s5 = inlined_call_operand.vmem [shape: f32[1,128], index: 5, kind: input, shape index: {}]
  %s6 = inlined_call_operand.<no memory space> [shape: f32[1,1], index: 6, kind: input, shape index: {}]
  %s7 = inlined_call_operand.vmem [shape: f32[4,128], index: 7, kind: input, shape index: {}]
  %s8 = inlined_call_operand.vmem [shape: f32[1,128], index: 8, kind: input, shape index: {}]
  %s9 = inlined_call_operand.hbm [shape: f32[512,128], index: 9, kind: output, shape index: {}]
  %s10 = sld [smem:[#allocation0]]
  $region69: #{tpu_custom_call.1} parent=0
    _
  %s12 = ssub.s32 1, %s10
  %s13 = scalar_select 0, %s12, %s10
  %14 = sst [smem:[#allocation2]] %s6
  $region1: #{tpu_custom_call.1} parent=0
    #allocation3 [shape = 'u8[262144]{0}', space=vmem, size = 0x40000, scoped, tag = 'output window, operand 0']
    #allocation4 [shape = 's32[2]{0}', space=sflag, size = 0x8, scoped, tag = 'scoped memory for tpu_custom_call.1']
    %15 = vsyncpa [#allocation4], 0
    %s16 = scalar_lea.sflag [#allocation4], 1
    %17 = vsyncpa %s16, 0
    loop: start=0, step=1, limit=4
    $region2: #{tpu_custom_call.1} parent=1 // loop_pre_header
      _
    $region3: #{tpu_custom_call.1} parent=1 // loop_header
      %s19 = sphi 0, %s23
      %p20 = scmp.ge.s32.totalorder %s19, 4
      %s29 = sphi 0, %s31
      %s32 = sphi 0, %s29
      %s33 = sphi 0, %s32
      %s49 = sphi 0, %s33
      %s53 = sphi 0, %s53
      %s55 = sphi 0, %s53
      %s56 = sphi 0, %s55
      %s70 = sphi 0, %s56
      %s74 = sphi 0, %s74
      %s76 = sphi 0, %s74
      %s77 = sphi 0, %s76
      %s91 = sphi 0, %s77
      %s95 = sphi 0, %s95
      %s97 = sphi 0, %s95
      %s98 = sphi 0, %s97
      %s112 = sphi 0, %s98
      %s116 = sphi 0, %s116
      %s118 = sphi 0, %s116
      %s119 = sphi 0, %s118
      %s133 = sphi 0, %s119
      %s137 = sphi 0, %s137
      %s139 = sphi 0, %s137
      %s140 = sphi 0, %s139
      %s154 = sphi 0, %s140
      %s158 = sphi 0, %s158
      %s160 = sphi 0, %s158
      %s161 = sphi 0, %s160
      %s175 = sphi 0, %s161
      %s179 = sphi 0, %s179
      %s181 = sphi 0, %s179
      %s182 = sphi 0, %s181
      %s196 = sphi 0, %s182
      %s200 = sphi 0, %s200
      %s202 = sphi 0, %s200
      %s203 = sphi 0, %s202
      %s217 = sphi 0, %s203
      %s223 = sphi 0, %s225
      %s226 = sphi 0, %s223
      %s227 = sphi 0, %s226
      %s243 = sphi 0, %s227
    $region4: #{tpu_custom_call.1} parent=1 // loop_header_branch
      %22 = sbr.rel (%p20) target = $region8
    $region5: #{tpu_custom_call.1} parent=1 // loop_body
      %s24 = ssub.s32 %s19, 1
      %s25 = ssub.s32 %s19, 2
      %s26 = sadd.s32 %s19, 1
      %s27 = ssub.s32 %s19, %s26
      %p28 = scmp.eq.s32.totalorder %s27, 0
      %s30 = sadd.s32 %s29, 1
      %s31 = scalar_select %p28, %s29, %s30
      %p34 = pneg %p28
      %p35 = scmp.eq.s32.totalorder %s19, 1
      %p36 = por %p34, %p35
      %p37 = scmp.ne.s32.totalorder %s29, %s32
      %p38 = scmp.eq.s32.totalorder %s19, 0
      %p39 = por %p37, %p38
      %p40 = scmp.ne.s32.totalorder %s29, %s32
      %p41 = scmp.eq.s32.totalorder %s24, 1
      %p42 = por %p40, %p41
      %p43 = scmp.ne.s32.totalorder %s32, %s33
      %p44 = scmp.eq.s32.totalorder %s24, 0
      %p45 = por %p43, %p44
      %p46 = scmp.ne.s32.totalorder %s32, %s33
      %p47 = scmp.eq.s32.totalorder %s25, 1
      %p48 = por %p46, %p47
      %p50 = scmp.ne.s32.totalorder %s33, %s49
      %p51 = scmp.eq.s32.totalorder %s25, 0
      %p52 = por %p50, %p51
      %s54 = sadd.s32 %s53, 1
      %p57 = scmp.eq.s32.totalorder %s19, 1
      %p58 = scmp.ne.s32.totalorder %s53, %s55
      %p59 = scmp.eq.s32.totalorder %s19, 0
      %p60 = por %p58, %p59
      %p61 = scmp.ne.s32.totalorder %s53, %s55
      %p62 = scmp.eq.s32.totalorder %s24, 1
      %p63 = por %p61, %p62
      %p64 = scmp.ne.s32.totalorder %s55, %s56
      %p65 = scmp.eq.s32.totalorder %s24, 0
      %p66 = por %p64, %p65
      %p67 = scmp.ne.s32.totalorder %s55, %s56
      %p68 = scmp.eq.s32.totalorder %s25, 1
      %p69 = por %p67, %p68
      %p71 = scmp.ne.s32.totalorder %s56, %s70
      %p72 = scmp.eq.s32.totalorder %s25, 0
      %p73 = por %p71, %p72
      %s75 = sadd.s32 %s74, 1
      %p78 = scmp.eq.s32.totalorder %s19, 1
      %p79 = scmp.ne.s32.totalorder %s74, %s76
      %p80 = scmp.eq.s32.totalorder %s19, 0
      %p81 = por %p79, %p80
      %p82 = scmp.ne.s32.totalorder %s74, %s76
      %p83 = scmp.eq.s32.totalorder %s24, 1
      %p84 = por %p82, %p83
      %p85 = scmp.ne.s32.totalorder %s76, %s77
      %p86 = scmp.eq.s32.totalorder %s24, 0
      %p87 = por %p85, %p86
      %p88 = scmp.ne.s32.totalorder %s76, %s77
      %p89 = scmp.eq.s32.totalorder %s25, 1
      %p90 = por %p88, %p89
      %p92 = scmp.ne.s32.totalorder %s77, %s91
      %p93 = scmp.eq.s32.totalorder %s25, 0
      %p94 = por %p92, %p93
      %s96 = sadd.s32 %s95, 1
      %p99 = scmp.eq.s32.totalorder %s19, 1
      %p100 = scmp.ne.s32.totalorder %s95, %s97
      %p101 = scmp.eq.s32.totalorder %s19, 0
      %p102 = por %p100, %p101
      %p103 = scmp.ne.s32.totalorder %s95, %s97
      %p104 = scmp.eq.s32.totalorder %s24, 1
      %p105 = por %p103, %p104
      %p106 = scmp.ne.s32.totalorder %s97, %s98
      %p107 = scmp.eq.s32.totalorder %s24, 0
      %p108 = por %p106, %p107
      %p109 = scmp.ne.s32.totalorder %s97, %s98
      %p110 = scmp.eq.s32.totalorder %s25, 1
      %p111 = por %p109, %p110
      %p113 = scmp.ne.s32.totalorder %s98, %s112
      %p114 = scmp.eq.s32.totalorder %s25, 0
      %p115 = por %p113, %p114
      %s117 = sadd.s32 %s116, 1
      %p120 = scmp.eq.s32.totalorder %s19, 1
      %p121 = scmp.ne.s32.totalorder %s116, %s118
      %p122 = scmp.eq.s32.totalorder %s19, 0
      %p123 = por %p121, %p122
      %p124 = scmp.ne.s32.totalorder %s116, %s118
      %p125 = scmp.eq.s32.totalorder %s24, 1
      %p126 = por %p124, %p125
      %p127 = scmp.ne.s32.totalorder %s118, %s119
      %p128 = scmp.eq.s32.totalorder %s24, 0
      %p129 = por %p127, %p128
      %p130 = scmp.ne.s32.totalorder %s118, %s119
      %p131 = scmp.eq.s32.totalorder %s25, 1
      %p132 = por %p130, %p131
      %p134 = scmp.ne.s32.totalorder %s119, %s133
      %p135 = scmp.eq.s32.totalorder %s25, 0
      %p136 = por %p134, %p135
      %s138 = sadd.s32 %s137, 1
      %p141 = scmp.eq.s32.totalorder %s19, 1
      %p142 = scmp.ne.s32.totalorder %s137, %s139
      %p143 = scmp.eq.s32.totalorder %s19, 0
      %p144 = por %p142, %p143
      %p145 = scmp.ne.s32.totalorder %s137, %s139
      %p146 = scmp.eq.s32.totalorder %s24, 1
      %p147 = por %p145, %p146
      %p148 = scmp.ne.s32.totalorder %s139, %s140
      %p149 = scmp.eq.s32.totalorder %s24, 0
      %p150 = por %p148, %p149
      %p151 = scmp.ne.s32.totalorder %s139, %s140
      %p152 = scmp.eq.s32.totalorder %s25, 1
      %p153 = por %p151, %p152
      %p155 = scmp.ne.s32.totalorder %s140, %s154
      %p156 = scmp.eq.s32.totalorder %s25, 0
      %p157 = por %p155, %p156
      %s159 = sadd.s32 %s158, 1
      %p162 = scmp.eq.s32.totalorder %s19, 1
      %p163 = scmp.ne.s32.totalorder %s158, %s160
      %p164 = scmp.eq.s32.totalorder %s19, 0
      %p165 = por %p163, %p164
      %p166 = scmp.ne.s32.totalorder %s158, %s160
      %p167 = scmp.eq.s32.totalorder %s24, 1
      %p168 = por %p166, %p167
      %p169 = scmp.ne.s32.totalorder %s160, %s161
      %p170 = scmp.eq.s32.totalorder %s24, 0
      %p171 = por %p169, %p170
      %p172 = scmp.ne.s32.totalorder %s160, %s161
      %p173 = scmp.eq.s32.totalorder %s25, 1
      %p174 = por %p172, %p173
      %p176 = scmp.ne.s32.totalorder %s161, %s175
      %p177 = scmp.eq.s32.totalorder %s25, 0
      %p178 = por %p176, %p177
      %s180 = sadd.s32 %s179, 1
      %p183 = scmp.eq.s32.totalorder %s19, 1
      %p184 = scmp.ne.s32.totalorder %s179, %s181
      %p185 = scmp.eq.s32.totalorder %s19, 0
      %p186 = por %p184, %p185
      %p187 = scmp.ne.s32.totalorder %s179, %s181
      %p188 = scmp.eq.s32.totalorder %s24, 1
      %p189 = por %p187, %p188
      %p190 = scmp.ne.s32.totalorder %s181, %s182
      %p191 = scmp.eq.s32.totalorder %s24, 0
      %p192 = por %p190, %p191
      %p193 = scmp.ne.s32.totalorder %s181, %s182
      %p194 = scmp.eq.s32.totalorder %s25, 1
      %p195 = por %p193, %p194
      %p197 = scmp.ne.s32.totalorder %s182, %s196
      %p198 = scmp.eq.s32.totalorder %s25, 0
      %p199 = por %p197, %p198
      %s201 = sadd.s32 %s200, 1
      %p204 = scmp.eq.s32.totalorder %s19, 1
      %p205 = scmp.ne.s32.totalorder %s200, %s202
      %p206 = scmp.eq.s32.totalorder %s19, 0
      %p207 = por %p205, %p206
      %p208 = scmp.ne.s32.totalorder %s200, %s202
      %p209 = scmp.eq.s32.totalorder %s24, 1
      %p210 = por %p208, %p209
      %p211 = scmp.ne.s32.totalorder %s202, %s203
      %p212 = scmp.eq.s32.totalorder %s24, 0
      %p213 = por %p211, %p212
      %p214 = scmp.ne.s32.totalorder %s202, %s203
      %p215 = scmp.eq.s32.totalorder %s25, 1
      %p216 = por %p214, %p215
      %p218 = scmp.ne.s32.totalorder %s203, %s217
      %p219 = scmp.eq.s32.totalorder %s25, 0
      %p220 = por %p218, %p219
      %s221 = ssub.s32 %s19, %s26
      %p222 = scmp.eq.s32.totalorder %s221, 0
      %s224 = sadd.s32 %s223, 1
      %s225 = scalar_select %p222, %s223, %s224
      %p228 = pneg %p222
      %p229 = scmp.eq.s32.totalorder %s19, 1
      %p230 = por %p228, %p229
      %p231 = scmp.ne.s32.totalorder %s223, %s226
      %p232 = scmp.eq.s32.totalorder %s19, 0
      %p233 = por %p231, %p232
      %p234 = scmp.ne.s32.totalorder %s223, %s226
      %p235 = scmp.eq.s32.totalorder %s24, 1
      %p236 = por %p234, %p235
      %p237 = scmp.ne.s32.totalorder %s226, %s227
      %p238 = scmp.eq.s32.totalorder %s24, 0
      %p239 = por %p237, %p238
      %p240 = scmp.ne.s32.totalorder %s226, %s227
      %p241 = scmp.eq.s32.totalorder %s25, 1
      %p242 = por %p240, %p241
      %p244 = scmp.ne.s32.totalorder %s227, %s243
      %p245 = scmp.eq.s32.totalorder %s25, 0
      %p246 = por %p244, %p245
      %p247 = scmp.le.s32.totalorder 1, %s19
      %p248 = scmp.lt.s32.totalorder %s19, 3
      %p249 = pnand %p247, %p248
      %p250 = pneg %p249
      // Predicated region
      $region9: #{tpu_custom_call.1} parent=5 // pred_check
        _
      $region10: #{tpu_custom_call.1} parent=5 // pred_check_branch
        %252 = sbr.rel (%p249) target = $region12
      $region11: #{tpu_custom_call.1} parent=5 // pred_region
        %s253 = ssub.s32 %s19, 1
        // Predicated region
        $region13: #{tpu_custom_call.1} parent=11 // pred_check
          %p254 = pneg %p66
        $region14: #{tpu_custom_call.1} parent=11 // pred_check_branch
          %256 = sbr.rel (%p254) target = $region16
        $region15: #{tpu_custom_call.1} parent=11 // pred_region
          _
        $region16: #{tpu_custom_call.1} parent=11 // pred_fallthru
          _
        // Predicated region
        $region17: #{tpu_custom_call.1} parent=11 // pred_check
          %p257 = pneg %p87
        $region18: #{tpu_custom_call.1} parent=11 // pred_check_branch
          %259 = sbr.rel (%p257) target = $region20
        $region19: #{tpu_custom_call.1} parent=11 // pred_region
          _
        $region20: #{tpu_custom_call.1} parent=11 // pred_fallthru
          _
        // Predicated region
        $region21: #{tpu_custom_call.1} parent=11 // pred_check
          %p260 = pneg %p108
        $region22: #{tpu_custom_call.1} parent=11 // pred_check_branch
          %262 = sbr.rel (%p260) target = $region24
        $region23: #{tpu_custom_call.1} parent=11 // pred_region
          _
        $region24: #{tpu_custom_call.1} parent=11 // pred_fallthru
          _
        // Predicated region
        $region25: #{tpu_custom_call.1} parent=11 // pred_check
          %p263 = pneg %p129
        $region26: #{tpu_custom_call.1} parent=11 // pred_check_branch
          %265 = sbr.rel (%p263) target = $region28
        $region27: #{tpu_custom_call.1} parent=11 // pred_region
          _
        $region28: #{tpu_custom_call.1} parent=11 // pred_fallthru
          _
        // Predicated region
        $region29: #{tpu_custom_call.1} parent=11 // pred_check
          %p266 = pneg %p150
        $region30: #{tpu_custom_call.1} parent=11 // pred_check_branch
          %268 = sbr.rel (%p266) target = $region32
        $region31: #{tpu_custom_call.1} parent=11 // pred_region
          _
        $region32: #{tpu_custom_call.1} parent=11 // pred_fallthru
          _
        // Predicated region
        $region33: #{tpu_custom_call.1} parent=11 // pred_check
          %p269 = pneg %p171
        $region34: #{tpu_custom_call.1} parent=11 // pred_check_branch
          %271 = sbr.rel (%p269) target = $region36
        $region35: #{tpu_custom_call.1} parent=11 // pred_region
          _
        $region36: #{tpu_custom_call.1} parent=11 // pred_fallthru
          _
        // Predicated region
        $region37: #{tpu_custom_call.1} parent=11 // pred_check
          %p272 = pneg %p192
        $region38: #{tpu_custom_call.1} parent=11 // pred_check_branch
          %274 = sbr.rel (%p272) target = $region40
        $region39: #{tpu_custom_call.1} parent=11 // pred_region
          _
        $region40: #{tpu_custom_call.1} parent=11 // pred_fallthru
          _
        // Predicated region
        $region41: #{tpu_custom_call.1} parent=11 // pred_check
          %p275 = pneg %p213
        $region42: #{tpu_custom_call.1} parent=11 // pred_check_branch
          %277 = sbr.rel (%p275) target = $region44
        $region43: #{tpu_custom_call.1} parent=11 // pred_region
          _
        $region44: #{tpu_custom_call.1} parent=11 // pred_fallthru
          _
      $region12: #{tpu_custom_call.1} parent=5 // pred_fallthru
        _
      %p278 = scmp.lt.s32.totalorder %s19, 2
      // Predicated region
      $region45: #{tpu_custom_call.1} parent=5 // pred_check
        %p279 = pneg %p278
      $region46: #{tpu_custom_call.1} parent=5 // pred_check_branch
        %281 = sbr.rel (%p279) target = $region48
      $region47: #{tpu_custom_call.1} parent=5 // pred_region
        // Predicated region
        $region49: #{tpu_custom_call.1} parent=47 // pred_check
          %p282 = pneg %p39
        $region50: #{tpu_custom_call.1} parent=47 // pred_check_branch
          %284 = sbr.rel (%p282) target = $region52
        $region51: #{tpu_custom_call.1} parent=47 // pred_region
          %s285 = smul.u32 32, %s19
          %p286 = scmp.lt.s32.totalorder %s285, 63
          %s287 = scalar_select %p286, %s285, 63
          %s288 = smul.addr %s287, 8
          %s289 = scalar_lea.vmem %s0, %s288
          %s290 = smul.u32 32, %s19
        $region52: #{tpu_custom_call.1} parent=47 // pred_fallthru
          _
      $region48: #{tpu_custom_call.1} parent=5 // pred_fallthru
        _
      %p291 = scmp.le.s32.totalorder 1, %s19
      %p292 = scmp.lt.s32.totalorder %s19, 3
      %p293 = pnand %p291, %p292
      %p294 = pneg %p293
      // Predicated region
      $region53: #{tpu_custom_call.1} parent=5 // pred_check
        _
      $region54: #{tpu_custom_call.1} parent=5 // pred_check_branch
        %296 = sbr.rel (%p293) target = $region56
      $region55: #{tpu_custom_call.1} parent=5 // pred_region
        %s297 = ssub.s32 %s19, 1
        %s298 = smul.u32 32, %s24
        %p299 = scmp.lt.s32.totalorder %s298, 63
        %s300 = scalar_select %p299, %s298, 63
        %s301 = smul.addr %s300, 8
        %s302 = scalar_lea.vmem %s0, %s301
        %p303 = pneg %p45
        %p304 = pneg %p42
        %p305 = pneg %p66
        %p306 = pneg %p63
        %p307 = pneg %p87
        %p308 = pneg %p84
        %p309 = pneg %p108
        %p310 = pneg %p105
        %p311 = pneg %p129
        %p312 = pneg %p126
        %p313 = pneg %p150
        %p314 = pneg %p147
        %p315 = pneg %p171
        %p316 = pneg %p168
        %p317 = pneg %p192
        %p318 = pneg %p189
        %p319 = pneg %p213
        %p320 = pneg %p210
        %p321 = pneg %p239
        %p322 = pneg %p236
        %s323 = sand.u32 %s226, 1
        %s324 = scalar_lea.sflag [#allocation4], %s323
        %s325 = sand.u32 %s226, 1
        %s326 = smul.addr %s325, 256
        %s327 = scalar_lea.vmem [#allocation3], %s326
        %s328 = smul.u32 32, %s24
        %p329 = scmp.lt.s32.totalorder %s328, 63
        %s330 = scalar_select %p329, %s328, 63
        %s331 = smul.addr %s330, 8
        %s332 = scalar_lea.vmem %s0, %s331
        %s333 = smul.u32 32, %s24
        %s334 = smul.u32 32, %s24
        %v335 = vld [vmem:[%s332] sm:$0xff]
        %v336 = vld [vmem:[%s332 + $0x8] sm:$0xff]
        %v337 = vld [vmem:[%s332 + $0x10] sm:$0xff]
        %v338 = vld [vmem:[%s332 + $0x18] sm:$0xff]
        %v339 = vld [vmem:[%s332 + $0x20] sm:$0xff]
        %v340 = vld [vmem:[%s332 + $0x28] sm:$0xff]
        %v341 = vld [vmem:[%s332 + $0x30] sm:$0xff]
        %v342 = vld [vmem:[%s332 + $0x38] sm:$0xff]
        %v343 = vld [vmem:[%s332 + $0x40] sm:$0xff]
        %v344 = vld [vmem:[%s332 + $0x48] sm:$0xff]
        %v345 = vld [vmem:[%s332 + $0x50] sm:$0xff]
        %v346 = vld [vmem:[%s332 + $0x58] sm:$0xff]
        %v347 = vld [vmem:[%s332 + $0x60] sm:$0xff]
        %v348 = vld [vmem:[%s332 + $0x68] sm:$0xff]
        %v349 = vld [vmem:[%s332 + $0x70] sm:$0xff]
        %v350 = vld [vmem:[%s332 + $0x78] sm:$0xff]
        %v351 = vld [vmem:[%s332 + $0x80] sm:$0xff]
        %v352 = vld [vmem:[%s332 + $0x88] sm:$0xff]
        %v353 = vld [vmem:[%s332 + $0x90] sm:$0xff]
        %v354 = vld [vmem:[%s332 + $0x98] sm:$0xff]
        %v355 = vld [vmem:[%s332 + $0xa0] sm:$0xff]
        %v356 = vld [vmem:[%s332 + $0xa8] sm:$0xff]
        %v357 = vld [vmem:[%s332 + $0xb0] sm:$0xff]
        %v358 = vld [vmem:[%s332 + $0xb8] sm:$0xff]
        %v359 = vld [vmem:[%s332 + $0xc0] sm:$0xff]
        %v360 = vld [vmem:[%s332 + $0xc8] sm:$0xff]
        %v361 = vld [vmem:[%s332 + $0xd0] sm:$0xff]
        %v362 = vld [vmem:[%s332 + $0xd8] sm:$0xff]
        %v363 = vld [vmem:[%s332 + $0xe0] sm:$0xff]
        %v364 = vld [vmem:[%s332 + $0xe8] sm:$0xff]
        %v365 = vld [vmem:[%s332 + $0xf0] sm:$0xff]
        %v366 = vld [vmem:[%s332 + $0xf8] sm:$0xff]
        %v367 = vld [vmem:[%s1] sm:$0xf]
        %v368 = vld [vmem:[%s2] sm:$0x1]
        %v370 = vlaneseq
        %v371 = vshrl.u32 %v370, 7
        %v372 = vsub.s32 0, %v371
        %v373 = vrot.slane %v368, %v372
        %vm375 = vcmask 31744
        %v377 = vsel %vm375, %v335, 0
        %v380 = vsel %vm375, %v336, 0
        %v383 = vsel %vm375, %v337, 0
        %v386 = vsel %vm375, %v338, 0
        %v389 = vsel %vm375, %v339, 0
        %v392 = vsel %vm375, %v340, 0
        %v395 = vsel %vm375, %v341, 0
        %v398 = vsel %vm375, %v342, 0
        %v401 = vsel %vm375, %v343, 0
        %v404 = vsel %vm375, %v344, 0
        %v407 = vsel %vm375, %v345, 0
        %v410 = vsel %vm375, %v346, 0
        %v413 = vsel %vm375, %v347, 0
        %v416 = vsel %vm375, %v348, 0
        %v419 = vsel %vm375, %v349, 0
        %v422 = vsel %vm375, %v350, 0
        %v425 = vsel %vm375, %v351, 0
        %v428 = vsel %vm375, %v352, 0
        %v431 = vsel %vm375, %v353, 0
        %v434 = vsel %vm375, %v354, 0
        %v437 = vsel %vm375, %v355, 0
        %v440 = vsel %vm375, %v356, 0
        %v443 = vsel %vm375, %v357, 0
        %v446 = vsel %vm375, %v358, 0
        %v449 = vsel %vm375, %v359, 0
        %v452 = vsel %vm375, %v360, 0
        %v455 = vsel %vm375, %v361, 0
        %v458 = vsel %vm375, %v362, 0
        %v461 = vsel %vm375, %v363, 0
        %v464 = vsel %vm375, %v364, 0
        %v467 = vsel %vm375, %v365, 0
        %v470 = vsel %vm375, %v366, 0
        %vm472 = vcmask 1043456
        %v474 = vsel %vm472, %v367, 0
        %476 = vmatprep.subr.mxu0 0.0
        %477 = vmatpush1.msra.mxu0 0.0
        %478 = vmatprep.subr.mxu0 0.0
        %479 = vmatpush1.msra.mxu0 0.0
        %480 = vmatprep.subr.mxu0 0.0
        %481 = vmatpush1.msra.mxu0 0.0
        %482 = vmatprep.subr.mxu0 0.0
        %483 = vmatpush1.msra.mxu0 0.0
        %484 = vmatprep.subr.mxu0 0.0
        %485 = vmatpush1.msra.mxu0 0.0
        %486 = vmatprep.subr.mxu0 0.0
        %487 = vmatpush1.msra.mxu0 0.0
        %488 = vmatprep.subr.mxu0 0.0
        %489 = vmatpush1.msra.mxu0 0.0
        %490 = vmatprep.subr.mxu0 0.0
        %491 = vmatpush1.msra.mxu0 0.0
        %492 = vmatprep.subr.mxu0 0.0
        %493 = vmatpush1.msra.mxu0 0.0
        %494 = vmatprep.subr.mxu0 0.0
        %495 = vmatpush1.msra.mxu0 0.0
        %496 = vmatprep.subr.mxu0 0.0
        %497 = vmatpush1.msra.mxu0 0.0
        %498 = vmatprep.subr.mxu0 0.0
        %499 = vmatpush1.msra.mxu0 0.0
        %500 = vmatprep.subr.mxu0 0.0
        %501 = vmatpush1.msra.mxu0 0.0
        %502 = vmatprep.subr.mxu0 0.0
        %503 = vmatpush1.msra.mxu0 0.0
        %504 = vmatprep.subr.mxu0 0.0
        %505 = vmatpush1.msra.mxu0 0.0
        %506 = vmatprep.subr.mxu0 0.0
        %507 = vmatpush1.msra.mxu0 %v474
        %508 = vmatprep.subr.mxu0 0.0
        %509 = vmatpush2.msra.mxu0 0.0
        %510 = vmatprep.subr.mxu0 0.0
        %511 = vmatpush2.msra.mxu0 0.0
        %512 = vmatprep.subr.mxu0 0.0
        %513 = vmatpush2.msra.mxu0 0.0
        %514 = vmatprep.subr.mxu0 0.0
        %515 = vmatpush2.msra.mxu0 0.0
        %516 = vmatprep.subr.mxu0 0.0
        %517 = vmatpush2.msra.mxu0 0.0
        %518 = vmatprep.subr.mxu0 0.0
        %519 = vmatpush2.msra.mxu0 0.0
        %520 = vmatprep.subr.mxu0 0.0
        %521 = vmatpush2.msra.mxu0 0.0
        %522 = vmatprep.subr.mxu0 0.0
        %523 = vmatpush2.msra.mxu0 0.0
        %524 = vmatprep.subr.mxu0 0.0
        %525 = vmatpush2.msra.mxu0 0.0
        %526 = vmatprep.subr.mxu0 0.0
        %527 = vmatpush2.msra.mxu0 0.0
        %528 = vmatprep.subr.mxu0 0.0
        %529 = vmatpush2.msra.mxu0 0.0
        %530 = vmatprep.subr.mxu0 0.0
        %531 = vmatpush2.msra.mxu0 0.0
        %532 = vmatprep.subr.mxu0 0.0
        %533 = vmatpush2.msra.mxu0 0.0
        %534 = vmatprep.subr.mxu0 0.0
        %535 = vmatpush2.msra.mxu0 0.0
        %536 = vmatprep.subr.mxu0 0.0
        %537 = vmatpush2.msra.mxu0 0.0
        %538 = vmatprep.subr.mxu0 0.0
        %539 = vmatpush2.msra.mxu0 0.0
        %540 = vmatprep.mubr.f32.mxu0 0.0
        %541 = vmatmul.mubr.f32.gmra.mxu0 %v377
        %v542 = vpop.f32.mrf.mxu0
        %v543 = vadd.f32 %v373, %v542
        %v544 = vpop.f32.mrf.mxu0
        %545 = vmatprep.mubr.f32.mxu0 0.0
        %546 = vmatmul.mubr.f32.gmra.mxu0 %v380
        %v547 = vpop.f32.mrf.mxu0
        %v548 = vadd.f32 %v373, %v547
        %v549 = vpop.f32.mrf.mxu0
        %550 = vmatprep.mubr.f32.mxu0 0.0
        %551 = vmatmul.mubr.f32.gmra.mxu0 %v383
        %v552 = vpop.f32.mrf.mxu0
        %v553 = vadd.f32 %v373, %v552
        %v554 = vpop.f32.mrf.mxu0
        %555 = vmatprep.mubr.f32.mxu0 0.0
        %556 = vmatmul.mubr.f32.gmra.mxu0 %v386
        %v557 = vpop.f32.mrf.mxu0
        %v558 = vadd.f32 %v373, %v557
        %v559 = vpop.f32.mrf.mxu0
        %560 = vmatprep.mubr.f32.mxu0 0.0
        %561 = vmatmul.mubr.f32.gmra.mxu0 %v389
        %v562 = vpop.f32.mrf.mxu0
        %v563 = vadd.f32 %v373, %v562
        %v564 = vpop.f32.mrf.mxu0
        %565 = vmatprep.mubr.f32.mxu0 0.0
        %566 = vmatmul.mubr.f32.gmra.mxu0 %v392
        %v567 = vpop.f32.mrf.mxu0
        %v568 = vadd.f32 %v373, %v567
        %v569 = vpop.f32.mrf.mxu0
        %570 = vmatprep.mubr.f32.mxu0 0.0
        %571 = vmatmul.mubr.f32.gmra.mxu0 %v395
        %v572 = vpop.f32.mrf.mxu0
        %v573 = vadd.f32 %v373, %v572
        %v574 = vpop.f32.mrf.mxu0
        %575 = vmatprep.mubr.f32.mxu0 0.0
        %576 = vmatmul.mubr.f32.gmra.mxu0 %v398
        %v577 = vpop.f32.mrf.mxu0
        %v578 = vadd.f32 %v373, %v577
        %v579 = vpop.f32.mrf.mxu0
        %580 = vmatprep.mubr.f32.mxu0 0.0
        %581 = vmatmul.mubr.f32.gmra.mxu0 %v401
        %v582 = vpop.f32.mrf.mxu0
        %v583 = vadd.f32 %v373, %v582
        %v584 = vpop.f32.mrf.mxu0
        %585 = vmatprep.mubr.f32.mxu0 0.0
        %586 = vmatmul.mubr.f32.gmra.mxu0 %v404
        %v587 = vpop.f32.mrf.mxu0
        %v588 = vadd.f32 %v373, %v587
        %v589 = vpop.f32.mrf.mxu0
        %590 = vmatprep.mubr.f32.mxu0 0.0
        %591 = vmatmul.mubr.f32.gmra.mxu0 %v407
        %v592 = vpop.f32.mrf.mxu0
        %v593 = vadd.f32 %v373, %v592
        %v594 = vpop.f32.mrf.mxu0
        %595 = vmatprep.mubr.f32.mxu0 0.0
        %596 = vmatmul.mubr.f32.gmra.mxu0 %v410
        %v597 = vpop.f32.mrf.mxu0
        %v598 = vadd.f32 %v373, %v597
        %v599 = vpop.f32.mrf.mxu0
        %600 = vmatprep.mubr.f32.mxu0 0.0
        %601 = vmatmul.mubr.f32.gmra.mxu0 %v413
        %v602 = vpop.f32.mrf.mxu0
        %v603 = vadd.f32 %v373, %v602
        %v604 = vpop.f32.mrf.mxu0
        %605 = vmatprep.mubr.f32.mxu0 0.0
        %606 = vmatmul.mubr.f32.gmra.mxu0 %v416
        %v607 = vpop.f32.mrf.mxu0
        %v608 = vadd.f32 %v373, %v607
        %v609 = vpop.f32.mrf.mxu0
        %610 = vmatprep.mubr.f32.mxu0 0.0
        %611 = vmatmul.mubr.f32.gmra.mxu0 %v419
        %v612 = vpop.f32.mrf.mxu0
        %v613 = vadd.f32 %v373, %v612
        %v614 = vpop.f32.mrf.mxu0
        %615 = vmatprep.mubr.f32.mxu0 0.0
        %616 = vmatmul.mubr.f32.gmra.mxu0 %v422
        %v617 = vpop.f32.mrf.mxu0
        %v618 = vadd.f32 %v373, %v617
        %v619 = vpop.f32.mrf.mxu0
        %620 = vmatprep.mubr.f32.mxu0 0.0
        %621 = vmatmul.mubr.f32.gmra.mxu0 %v425
        %v622 = vpop.f32.mrf.mxu0
        %v623 = vadd.f32 %v373, %v622
        %v624 = vpop.f32.mrf.mxu0
        %625 = vmatprep.mubr.f32.mxu0 0.0
        %626 = vmatmul.mubr.f32.gmra.mxu0 %v428
        %v627 = vpop.f32.mrf.mxu0
        %v628 = vadd.f32 %v373, %v627
        %v629 = vpop.f32.mrf.mxu0
        %630 = vmatprep.mubr.f32.mxu0 0.0
        %631 = vmatmul.mubr.f32.gmra.mxu0 %v431
        %v632 = vpop.f32.mrf.mxu0
        %v633 = vadd.f32 %v373, %v632
        %v634 = vpop.f32.mrf.mxu0
        %635 = vmatprep.mubr.f32.mxu0 0.0
        %636 = vmatmul.mubr.f32.gmra.mxu0 %v434
        %v637 = vpop.f32.mrf.mxu0
        %v638 = vadd.f32 %v373, %v637
        %v639 = vpop.f32.mrf.mxu0
        %640 = vmatprep.mubr.f32.mxu0 0.0
        %641 = vmatmul.mubr.f32.gmra.mxu0 %v437
        %v642 = vpop.f32.mrf.mxu0
        %v643 = vadd.f32 %v373, %v642
        %v644 = vpop.f32.mrf.mxu0
        %645 = vmatprep.mubr.f32.mxu0 0.0
        %646 = vmatmul.mubr.f32.gmra.mxu0 %v440
        %v647 = vpop.f32.mrf.mxu0
        %v648 = vadd.f32 %v373, %v647
        %v649 = vpop.f32.mrf.mxu0
        %650 = vmatprep.mubr.f32.mxu0 0.0
        %651 = vmatmul.mubr.f32.gmra.mxu0 %v443
        %v652 = vpop.f32.mrf.mxu0
        %v653 = vadd.f32 %v373, %v652
        %v654 = vpop.f32.mrf.mxu0
        %655 = vmatprep.mubr.f32.mxu0 0.0
        %656 = vmatmul.mubr.f32.gmra.mxu0 %v446
        %v657 = vpop.f32.mrf.mxu0
        %v658 = vadd.f32 %v373, %v657
        %v659 = vpop.f32.mrf.mxu0
        %660 = vmatprep.mubr.f32.mxu0 0.0
        %661 = vmatmul.mubr.f32.gmra.mxu0 %v449
        %v662 = vpop.f32.mrf.mxu0
        %v663 = vadd.f32 %v373, %v662
        %v664 = vpop.f32.mrf.mxu0
        %665 = vmatprep.mubr.f32.mxu0 0.0
        %666 = vmatmul.mubr.f32.gmra.mxu0 %v452
        %v667 = vpop.f32.mrf.mxu0
        %v668 = vadd.f32 %v373, %v667
        %v669 = vpop.f32.mrf.mxu0
        %670 = vmatprep.mubr.f32.mxu0 0.0
        %671 = vmatmul.mubr.f32.gmra.mxu0 %v455
        %v672 = vpop.f32.mrf.mxu0
        %v673 = vadd.f32 %v373, %v672
        %v674 = vpop.f32.mrf.mxu0
        %675 = vmatprep.mubr.f32.mxu0 0.0
        %676 = vmatmul.mubr.f32.gmra.mxu0 %v458
        %v677 = vpop.f32.mrf.mxu0
        %v678 = vadd.f32 %v373, %v677
        %v679 = vpop.f32.mrf.mxu0
        %680 = vmatprep.mubr.f32.mxu0 0.0
        %681 = vmatmul.mubr.f32.gmra.mxu0 %v461
        %v682 = vpop.f32.mrf.mxu0
        %v683 = vadd.f32 %v373, %v682
        %v684 = vpop.f32.mrf.mxu0
        %685 = vmatprep.mubr.f32.mxu0 0.0
        %686 = vmatmul.mubr.f32.gmra.mxu0 %v464
        %v687 = vpop.f32.mrf.mxu0
        %v688 = vadd.f32 %v373, %v687
        %v689 = vpop.f32.mrf.mxu0
        %690 = vmatprep.mubr.f32.mxu0 0.0
        %691 = vmatmul.mubr.f32.gmra.mxu0 %v467
        %v692 = vpop.f32.mrf.mxu0
        %v693 = vadd.f32 %v373, %v692
        %v694 = vpop.f32.mrf.mxu0
        %695 = vmatprep.mubr.f32.mxu0 0.0
        %696 = vmatmul.mubr.f32.gmra.mxu0 %v470
        %v697 = vpop.f32.mrf.mxu0
        %v698 = vadd.f32 %v373, %v697
        %v699 = vpop.f32.mrf.mxu0
        %700 = vdwg.mxu0
        %v701 = vtanh.pop %v543
        %v702 = vtanh.pop %v548
        %v703 = vtanh.pop %v553
        %v704 = vtanh.pop %v558
        %v705 = vtanh.pop %v563
        %v706 = vtanh.pop %v568
        %v707 = vtanh.pop %v573
        %v708 = vtanh.pop %v578
        %v709 = vtanh.pop %v583
        %v710 = vtanh.pop %v588
        %v711 = vtanh.pop %v593
        %v712 = vtanh.pop %v598
        %v713 = vtanh.pop %v603
        %v714 = vtanh.pop %v608
        %v715 = vtanh.pop %v613
        %v716 = vtanh.pop %v618
        %v717 = vtanh.pop %v623
        %v718 = vtanh.pop %v628
        %v719 = vtanh.pop %v633
        %v720 = vtanh.pop %v638
        %v721 = vtanh.pop %v643
        %v722 = vtanh.pop %v648
        %v723 = vtanh.pop %v653
        %v724 = vtanh.pop %v658
        %v725 = vtanh.pop %v663
        %v726 = vtanh.pop %v668
        %v727 = vtanh.pop %v673
        %v728 = vtanh.pop %v678
        %v729 = vtanh.pop %v683
        %v730 = vtanh.pop %v688
        %v731 = vtanh.pop %v693
        %v732 = vtanh.pop %v698
        %v733 = vld [vmem:[%s3] sm:$0xff]
        %v734 = vld [vmem:[%s3 + $0x8] sm:$0xff]
        %v735 = vld [vmem:[%s3 + $0x10] sm:$0xff]
        %v736 = vld [vmem:[%s3 + $0x18] sm:$0xff]
        %v737 = vld [vmem:[%s3 + $0x20] sm:$0xff]
        %v738 = vld [vmem:[%s3 + $0x28] sm:$0xff]
        %v739 = vld [vmem:[%s3 + $0x30] sm:$0xff]
        %v740 = vld [vmem:[%s3 + $0x38] sm:$0xff]
        %v741 = vld [vmem:[%s3 + $0x40] sm:$0xff]
        %v742 = vld [vmem:[%s3 + $0x48] sm:$0xff]
        %v743 = vld [vmem:[%s3 + $0x50] sm:$0xff]
        %v744 = vld [vmem:[%s3 + $0x58] sm:$0xff]
        %v745 = vld [vmem:[%s3 + $0x60] sm:$0xff]
        %v746 = vld [vmem:[%s3 + $0x68] sm:$0xff]
        %v747 = vld [vmem:[%s3 + $0x70] sm:$0xff]
        %v748 = vld [vmem:[%s3 + $0x78] sm:$0xff]
        %v749 = vld [vmem:[%s4] sm:$0x1]
        %v751 = vlaneseq
        %v752 = vshrl.u32 %v751, 7
        %v753 = vsub.s32 0, %v752
        %v754 = vrot.slane %v749, %v753
        %756 = vmatprep.subr.mxu0 0.0
        %757 = vmatpush1.msra.mxu0 %v748
        %758 = vmatprep.subr.mxu0 0.0
        %759 = vmatpush1.msra.mxu0 %v747
        %760 = vmatprep.subr.mxu0 0.0
        %761 = vmatpush1.msra.mxu0 %v746
        %762 = vmatprep.subr.mxu0 0.0
        %763 = vmatpush1.msra.mxu0 %v745
        %764 = vmatprep.subr.mxu0 0.0
        %765 = vmatpush1.msra.mxu0 %v744
        %766 = vmatprep.subr.mxu0 0.0
        %767 = vmatpush1.msra.mxu0 %v743
        %768 = vmatprep.subr.mxu0 0.0
        %769 = vmatpush1.msra.mxu0 %v742
        %770 = vmatprep.subr.mxu0 0.0
        %771 = vmatpush1.msra.mxu0 %v741
        %772 = vmatprep.subr.mxu0 0.0
        %773 = vmatpush1.msra.mxu0 %v740
        %774 = vmatprep.subr.mxu0 0.0
        %775 = vmatpush1.msra.mxu0 %v739
        %776 = vmatprep.subr.mxu0 0.0
        %777 = vmatpush1.msra.mxu0 %v738
        %778 = vmatprep.subr.mxu0 0.0
        %779 = vmatpush1.msra.mxu0 %v737
        %780 = vmatprep.subr.mxu0 0.0
        %781 = vmatpush1.msra.mxu0 %v736
        %782 = vmatprep.subr.mxu0 0.0
        %783 = vmatpush1.msra.mxu0 %v735
        %784 = vmatprep.subr.mxu0 0.0
        %785 = vmatpush1.msra.mxu0 %v734
        %786 = vmatprep.subr.mxu0 0.0
        %787 = vmatpush1.msra.mxu0 %v733
        %788 = vmatprep.subr.mxu0 0.0
        %789 = vmatpush2.msra.mxu0 0.0
        %790 = vmatprep.subr.mxu0 0.0
        %791 = vmatpush2.msra.mxu0 0.0
        %792 = vmatprep.subr.mxu0 0.0
        %793 = vmatpush2.msra.mxu0 0.0
        %794 = vmatprep.subr.mxu0 0.0
        %795 = vmatpush2.msra.mxu0 0.0
        %796 = vmatprep.subr.mxu0 0.0
        %797 = vmatpush2.msra.mxu0 0.0
        %798 = vmatprep.subr.mxu0 0.0
        %799 = vmatpush2.msra.mxu0 0.0
        %800 = vmatprep.subr.mxu0 0.0
        %801 = vmatpush2.msra.mxu0 0.0
        %802 = vmatprep.subr.mxu0 0.0
        %803 = vmatpush2.msra.mxu0 0.0
        %804 = vmatprep.subr.mxu0 0.0
        %805 = vmatpush2.msra.mxu0 0.0
        %806 = vmatprep.subr.mxu0 0.0
        %807 = vmatpush2.msra.mxu0 0.0
        %808 = vmatprep.subr.mxu0 0.0
        %809 = vmatpush2.msra.mxu0 0.0
        %810 = vmatprep.subr.mxu0 0.0
        %811 = vmatpush2.msra.mxu0 0.0
        %812 = vmatprep.subr.mxu0 0.0
        %813 = vmatpush2.msra.mxu0 0.0
        %814 = vmatprep.subr.mxu0 0.0
        %815 = vmatpush2.msra.mxu0 0.0
        %816 = vmatprep.subr.mxu0 0.0
        %817 = vmatpush2.msra.mxu0 0.0
        %818 = vmatprep.subr.mxu0 0.0
        %819 = vmatpush2.msra.mxu0 0.0
        %820 = vmatprep.mubr.f32.mxu0 0.0
        %821 = vmatmul.mubr.f32.gmra.mxu0 %v701
        %v822 = vpop.f32.mrf.mxu0
        %v823 = vadd.f32 %v754, %v822
        %v824 = vpop.f32.mrf.mxu0
        %825 = vmatprep.mubr.f32.mxu0 0.0
        %826 = vmatmul.mubr.f32.gmra.mxu0 %v702
        %v827 = vpop.f32.mrf.mxu0
        %v828 = vadd.f32 %v754, %v827
        %v829 = vpop.f32.mrf.mxu0
        %830 = vmatprep.mubr.f32.mxu0 0.0
        %831 = vmatmul.mubr.f32.gmra.mxu0 %v703
        %v832 = vpop.f32.mrf.mxu0
        %v833 = vadd.f32 %v754, %v832
        %v834 = vpop.f32.mrf.mxu0
        %835 = vmatprep.mubr.f32.mxu0 0.0
        %836 = vmatmul.mubr.f32.gmra.mxu0 %v704
        %v837 = vpop.f32.mrf.mxu0
        %v838 = vadd.f32 %v754, %v837
        %v839 = vpop.f32.mrf.mxu0
        %840 = vmatprep.mubr.f32.mxu0 0.0
        %841 = vmatmul.mubr.f32.gmra.mxu0 %v705
        %v842 = vpop.f32.mrf.mxu0
        %v843 = vadd.f32 %v754, %v842
        %v844 = vpop.f32.mrf.mxu0
        %845 = vmatprep.mubr.f32.mxu0 0.0
        %846 = vmatmul.mubr.f32.gmra.mxu0 %v706
        %v847 = vpop.f32.mrf.mxu0
        %v848 = vadd.f32 %v754, %v847
        %v849 = vpop.f32.mrf.mxu0
        %850 = vmatprep.mubr.f32.mxu0 0.0
        %851 = vmatmul.mubr.f32.gmra.mxu0 %v707
        %v852 = vpop.f32.mrf.mxu0
        %v853 = vadd.f32 %v754, %v852
        %v854 = vpop.f32.mrf.mxu0
        %855 = vmatprep.mubr.f32.mxu0 0.0
        %856 = vmatmul.mubr.f32.gmra.mxu0 %v708
        %v857 = vpop.f32.mrf.mxu0
        %v858 = vadd.f32 %v754, %v857
        %v859 = vpop.f32.mrf.mxu0
        %860 = vmatprep.mubr.f32.mxu0 0.0
        %861 = vmatmul.mubr.f32.gmra.mxu0 %v709
        %v862 = vpop.f32.mrf.mxu0
        %v863 = vadd.f32 %v754, %v862
        %v864 = vpop.f32.mrf.mxu0
        %865 = vmatprep.mubr.f32.mxu0 0.0
        %866 = vmatmul.mubr.f32.gmra.mxu0 %v710
        %v867 = vpop.f32.mrf.mxu0
        %v868 = vadd.f32 %v754, %v867
        %v869 = vpop.f32.mrf.mxu0
        %870 = vmatprep.mubr.f32.mxu0 0.0
        %871 = vmatmul.mubr.f32.gmra.mxu0 %v711
        %v872 = vpop.f32.mrf.mxu0
        %v873 = vadd.f32 %v754, %v872
        %v874 = vpop.f32.mrf.mxu0
        %875 = vmatprep.mubr.f32.mxu0 0.0
        %876 = vmatmul.mubr.f32.gmra.mxu0 %v712
        %v877 = vpop.f32.mrf.mxu0
        %v878 = vadd.f32 %v754, %v877
        %v879 = vpop.f32.mrf.mxu0
        %880 = vmatprep.mubr.f32.mxu0 0.0
        %881 = vmatmul.mubr.f32.gmra.mxu0 %v713
        %v882 = vpop.f32.mrf.mxu0
        %v883 = vadd.f32 %v754, %v882
        %v884 = vpop.f32.mrf.mxu0
        %885 = vmatprep.mubr.f32.mxu0 0.0
        %886 = vmatmul.mubr.f32.gmra.mxu0 %v714
        %v887 = vpop.f32.mrf.mxu0
        %v888 = vadd.f32 %v754, %v887
        %v889 = vpop.f32.mrf.mxu0
        %890 = vmatprep.mubr.f32.mxu0 0.0
        %891 = vmatmul.mubr.f32.gmra.mxu0 %v715
        %v892 = vpop.f32.mrf.mxu0
        %v893 = vadd.f32 %v754, %v892
        %v894 = vpop.f32.mrf.mxu0
        %895 = vmatprep.mubr.f32.mxu0 0.0
        %896 = vmatmul.mubr.f32.gmra.mxu0 %v716
        %v897 = vpop.f32.mrf.mxu0
        %v898 = vadd.f32 %v754, %v897
        %v899 = vpop.f32.mrf.mxu0
        %900 = vmatprep.mubr.f32.mxu0 0.0
        %901 = vmatmul.mubr.f32.gmra.mxu0 %v717
        %v902 = vpop.f32.mrf.mxu0
        %v903 = vadd.f32 %v754, %v902
        %v904 = vpop.f32.mrf.mxu0
        %905 = vmatprep.mubr.f32.mxu0 0.0
        %906 = vmatmul.mubr.f32.gmra.mxu0 %v718
        %v907 = vpop.f32.mrf.mxu0
        %v908 = vadd.f32 %v754, %v907
        %v909 = vpop.f32.mrf.mxu0
        %910 = vmatprep.mubr.f32.mxu0 0.0
        %911 = vmatmul.mubr.f32.gmra.mxu0 %v719
        %v912 = vpop.f32.mrf.mxu0
        %v913 = vadd.f32 %v754, %v912
        %v914 = vpop.f32.mrf.mxu0
        %915 = vmatprep.mubr.f32.mxu0 0.0
        %916 = vmatmul.mubr.f32.gmra.mxu0 %v720
        %v917 = vpop.f32.mrf.mxu0
        %v918 = vadd.f32 %v754, %v917
        %v919 = vpop.f32.mrf.mxu0
        %920 = vmatprep.mubr.f32.mxu0 0.0
        %921 = vmatmul.mubr.f32.gmra.mxu0 %v721
        %v922 = vpop.f32.mrf.mxu0
        %v923 = vadd.f32 %v754, %v922
        %v924 = vpop.f32.mrf.mxu0
        %925 = vmatprep.mubr.f32.mxu0 0.0
        %926 = vmatmul.mubr.f32.gmra.mxu0 %v722
        %v927 = vpop.f32.mrf.mxu0
        %v928 = vadd.f32 %v754, %v927
        %v929 = vpop.f32.mrf.mxu0
        %930 = vmatprep.mubr.f32.mxu0 0.0
        %931 = vmatmul.mubr.f32.gmra.mxu0 %v723
        %v932 = vpop.f32.mrf.mxu0
        %v933 = vadd.f32 %v754, %v932
        %v934 = vpop.f32.mrf.mxu0
        %935 = vmatprep.mubr.f32.mxu0 0.0
        %936 = vmatmul.mubr.f32.gmra.mxu0 %v724
        %v937 = vpop.f32.mrf.mxu0
        %v938 = vadd.f32 %v754, %v937
        %v939 = vpop.f32.mrf.mxu0
        %940 = vmatprep.mubr.f32.mxu0 0.0
        %941 = vmatmul.mubr.f32.gmra.mxu0 %v725
        %v942 = vpop.f32.mrf.mxu0
        %v943 = vadd.f32 %v754, %v942
        %v944 = vpop.f32.mrf.mxu0
        %945 = vmatprep.mubr.f32.mxu0 0.0
        %946 = vmatmul.mubr.f32.gmra.mxu0 %v726
        %v947 = vpop.f32.mrf.mxu0
        %v948 = vadd.f32 %v754, %v947
        %v949 = vpop.f32.mrf.mxu0
        %950 = vmatprep.mubr.f32.mxu0 0.0
        %951 = vmatmul.mubr.f32.gmra.mxu0 %v727
        %v952 = vpop.f32.mrf.mxu0
        %v953 = vadd.f32 %v754, %v952
        %v954 = vpop.f32.mrf.mxu0
        %955 = vmatprep.mubr.f32.mxu0 0.0
        %956 = vmatmul.mubr.f32.gmra.mxu0 %v728
        %v957 = vpop.f32.mrf.mxu0
        %v958 = vadd.f32 %v754, %v957
        %v959 = vpop.f32.mrf.mxu0
        %960 = vmatprep.mubr.f32.mxu0 0.0
        %961 = vmatmul.mubr.f32.gmra.mxu0 %v729
        %v962 = vpop.f32.mrf.mxu0
        %v963 = vadd.f32 %v754, %v962
        %v964 = vpop.f32.mrf.mxu0
        %965 = vmatprep.mubr.f32.mxu0 0.0
        %966 = vmatmul.mubr.f32.gmra.mxu0 %v730
        %v967 = vpop.f32.mrf.mxu0
        %v968 = vadd.f32 %v754, %v967
        %v969 = vpop.f32.mrf.mxu0
        %970 = vmatprep.mubr.f32.mxu0 0.0
        %971 = vmatmul.mubr.f32.gmra.mxu0 %v731
        %v972 = vpop.f32.mrf.mxu0
        %v973 = vadd.f32 %v754, %v972
        %v974 = vpop.f32.mrf.mxu0
        %975 = vmatprep.mubr.f32.mxu0 0.0
        %976 = vmatmul.mubr.f32.gmra.mxu0 %v732
        %v977 = vpop.f32.mrf.mxu0
        %v978 = vadd.f32 %v754, %v977
        %v979 = vpop.f32.mrf.mxu0
        %980 = vdwg.mxu0
        %v981 = vtanh.pop %v823
        %v982 = vtanh.pop %v828
        %v983 = vtanh.pop %v833
        %v984 = vtanh.pop %v838
        %v985 = vtanh.pop %v843
        %v986 = vtanh.pop %v848
        %v987 = vtanh.pop %v853
        %v988 = vtanh.pop %v858
        %v989 = vtanh.pop %v863
        %v990 = vtanh.pop %v868
        %v991 = vtanh.pop %v873
        %v992 = vtanh.pop %v878
        %v993 = vtanh.pop %v883
        %v994 = vtanh.pop %v888
        %v995 = vtanh.pop %v893
        %v996 = vtanh.pop %v898
        %v997 = vtanh.pop %v903
        %v998 = vtanh.pop %v908
        %v999 = vtanh.pop %v913
        %v1000 = vtanh.pop %v918
        %v1001 = vtanh.pop %v923
        %v1002 = vtanh.pop %v928
        %v1003 = vtanh.pop %v933
        %v1004 = vtanh.pop %v938
        %v1005 = vtanh.pop %v943
        %v1006 = vtanh.pop %v948
        %v1007 = vtanh.pop %v953
        %v1008 = vtanh.pop %v958
        %v1009 = vtanh.pop %v963
        %v1010 = vtanh.pop %v968
        %v1011 = vtanh.pop %v973
        %v1012 = vtanh.pop %v978
        %v1013 = vld [vmem:[%s5] sm:$0x1]
        %v1015 = vlaneseq
        %v1016 = vshrl.u32 %v1015, 7
        %v1017 = vsub.s32 0, %v1016
        %v1018 = vrot.slane %v1013, %v1017
        %v1020 = vmul.f32 %v981, %v1018
        %v1021 = vmul.f32 %v982, %v1018
        %v1022 = vmul.f32 %v983, %v1018
        %v1023 = vmul.f32 %v984, %v1018
        %v1024 = vmul.f32 %v985, %v1018
        %v1025 = vmul.f32 %v986, %v1018
        %v1026 = vmul.f32 %v987, %v1018
        %v1027 = vmul.f32 %v988, %v1018
        %v1028 = vmul.f32 %v989, %v1018
        %v1029 = vmul.f32 %v990, %v1018
        %v1030 = vmul.f32 %v991, %v1018
        %v1031 = vmul.f32 %v992, %v1018
        %v1032 = vmul.f32 %v993, %v1018
        %v1033 = vmul.f32 %v994, %v1018
        %v1034 = vmul.f32 %v995, %v1018
        %v1035 = vmul.f32 %v996, %v1018
        %v1036 = vmul.f32 %v997, %v1018
        %v1037 = vmul.f32 %v998, %v1018
        %v1038 = vmul.f32 %v999, %v1018
        %v1039 = vmul.f32 %v1000, %v1018
        %v1040 = vmul.f32 %v1001, %v1018
        %v1041 = vmul.f32 %v1002, %v1018
        %v1042 = vmul.f32 %v1003, %v1018
        %v1043 = vmul.f32 %v1004, %v1018
        %v1044 = vmul.f32 %v1005, %v1018
        %v1045 = vmul.f32 %v1006, %v1018
        %v1046 = vmul.f32 %v1007, %v1018
        %v1047 = vmul.f32 %v1008, %v1018
        %v1048 = vmul.f32 %v1009, %v1018
        %v1049 = vmul.f32 %v1010, %v1018
        %v1050 = vmul.f32 %v1011, %v1018
        %v1051 = vmul.f32 %v1012, %v1018
        %1052 = vadd.xlane.f32.xlu0 %v1020
        %v1053 = vpop.xlane.xlu0 %1052
        %1054 = vadd.xlane.f32.xlu0 %v1021
        %v1055 = vpop.xlane.xlu0 %1054
        %1056 = vadd.xlane.f32.xlu0 %v1022
        %v1057 = vpop.xlane.xlu0 %1056
        %1058 = vadd.xlane.f32.xlu0 %v1023
        %v1059 = vpop.xlane.xlu0 %1058
        %1060 = vadd.xlane.f32.xlu0 %v1024
        %v1061 = vpop.xlane.xlu0 %1060
        %1062 = vadd.xlane.f32.xlu0 %v1025
        %v1063 = vpop.xlane.xlu0 %1062
        %1064 = vadd.xlane.f32.xlu0 %v1026
        %v1065 = vpop.xlane.xlu0 %1064
        %1066 = vadd.xlane.f32.xlu0 %v1027
        %v1067 = vpop.xlane.xlu0 %1066
        %1068 = vadd.xlane.f32.xlu0 %v1028
        %v1069 = vpop.xlane.xlu0 %1068
        %1070 = vadd.xlane.f32.xlu0 %v1029
        %v1071 = vpop.xlane.xlu0 %1070
        %1072 = vadd.xlane.f32.xlu0 %v1030
        %v1073 = vpop.xlane.xlu0 %1072
        %1074 = vadd.xlane.f32.xlu0 %v1031
        %v1075 = vpop.xlane.xlu0 %1074
        %1076 = vadd.xlane.f32.xlu0 %v1032
        %v1077 = vpop.xlane.xlu0 %1076
        %1078 = vadd.xlane.f32.xlu0 %v1033
        %v1079 = vpop.xlane.xlu0 %1078
        %1080 = vadd.xlane.f32.xlu0 %v1034
        %v1081 = vpop.xlane.xlu0 %1080
        %1082 = vadd.xlane.f32.xlu0 %v1035
        %v1083 = vpop.xlane.xlu0 %1082
        %1084 = vadd.xlane.f32.xlu0 %v1036
        %v1085 = vpop.xlane.xlu0 %1084
        %1086 = vadd.xlane.f32.xlu0 %v1037
        %v1087 = vpop.xlane.xlu0 %1086
        %1088 = vadd.xlane.f32.xlu0 %v1038
        %v1089 = vpop.xlane.xlu0 %1088
        %1090 = vadd.xlane.f32.xlu0 %v1039
        %v1091 = vpop.xlane.xlu0 %1090
        %1092 = vadd.xlane.f32.xlu0 %v1040
        %v1093 = vpop.xlane.xlu0 %1092
        %1094 = vadd.xlane.f32.xlu0 %v1041
        %v1095 = vpop.xlane.xlu0 %1094
        %1096 = vadd.xlane.f32.xlu0 %v1042
        %v1097 = vpop.xlane.xlu0 %1096
        %1098 = vadd.xlane.f32.xlu0 %v1043
        %v1099 = vpop.xlane.xlu0 %1098
        %1100 = vadd.xlane.f32.xlu0 %v1044
        %v1101 = vpop.xlane.xlu0 %1100
        %1102 = vadd.xlane.f32.xlu0 %v1045
        %v1103 = vpop.xlane.xlu0 %1102
        %1104 = vadd.xlane.f32.xlu0 %v1046
        %v1105 = vpop.xlane.xlu0 %1104
        %1106 = vadd.xlane.f32.xlu0 %v1047
        %v1107 = vpop.xlane.xlu0 %1106
        %1108 = vadd.xlane.f32.xlu0 %v1048
        %v1109 = vpop.xlane.xlu0 %1108
        %1110 = vadd.xlane.f32.xlu0 %v1049
        %v1111 = vpop.xlane.xlu0 %1110
        %1112 = vadd.xlane.f32.xlu0 %v1050
        %v1113 = vpop.xlane.xlu0 %1112
        %1114 = vadd.xlane.f32.xlu0 %v1051
        %v1115 = vpop.xlane.xlu0 %1114
        %s1116 = sld [smem:[#allocation2]]
        %v1117 = vstv %s1116
        %v1118 = vadd.f32 %v1053, %v1117
        %v1119 = vadd.f32 %v1055, %v1117
        %v1120 = vadd.f32 %v1057, %v1117
        %v1121 = vadd.f32 %v1059, %v1117
        %v1122 = vadd.f32 %v1061, %v1117
        %v1123 = vadd.f32 %v1063, %v1117
        %v1124 = vadd.f32 %v1065, %v1117
        %v1125 = vadd.f32 %v1067, %v1117
        %v1126 = vadd.f32 %v1069, %v1117
        %v1127 = vadd.f32 %v1071, %v1117
        %v1128 = vadd.f32 %v1073, %v1117
        %v1129 = vadd.f32 %v1075, %v1117
        %v1130 = vadd.f32 %v1077, %v1117
        %v1131 = vadd.f32 %v1079, %v1117
        %v1132 = vadd.f32 %v1081, %v1117
        %v1133 = vadd.f32 %v1083, %v1117
        %v1134 = vadd.f32 %v1085, %v1117
        %v1135 = vadd.f32 %v1087, %v1117
        %v1136 = vadd.f32 %v1089, %v1117
        %v1137 = vadd.f32 %v1091, %v1117
        %v1138 = vadd.f32 %v1093, %v1117
        %v1139 = vadd.f32 %v1095, %v1117
        %v1140 = vadd.f32 %v1097, %v1117
        %v1141 = vadd.f32 %v1099, %v1117
        %v1142 = vadd.f32 %v1101, %v1117
        %v1143 = vadd.f32 %v1103, %v1117
        %v1144 = vadd.f32 %v1105, %v1117
        %v1145 = vadd.f32 %v1107, %v1117
        %v1146 = vadd.f32 %v1109, %v1117
        %v1147 = vadd.f32 %v1111, %v1117
        %v1148 = vadd.f32 %v1113, %v1117
        %v1149 = vadd.f32 %v1115, %v1117
        %v1150 = vmax.f32 %v1118, 0.0
        %v1151 = vmax.f32 %v1119, 0.0
        %v1152 = vmax.f32 %v1120, 0.0
        %v1153 = vmax.f32 %v1121, 0.0
        %v1154 = vmax.f32 %v1122, 0.0
        %v1155 = vmax.f32 %v1123, 0.0
        %v1156 = vmax.f32 %v1124, 0.0
        %v1157 = vmax.f32 %v1125, 0.0
        %v1158 = vmax.f32 %v1126, 0.0
        %v1159 = vmax.f32 %v1127, 0.0
        %v1160 = vmax.f32 %v1128, 0.0
        %v1161 = vmax.f32 %v1129, 0.0
        %v1162 = vmax.f32 %v1130, 0.0
        %v1163 = vmax.f32 %v1131, 0.0
        %v1164 = vmax.f32 %v1132, 0.0
        %v1165 = vmax.f32 %v1133, 0.0
        %v1166 = vmax.f32 %v1134, 0.0
        %v1167 = vmax.f32 %v1135, 0.0
        %v1168 = vmax.f32 %v1136, 0.0
        %v1169 = vmax.f32 %v1137, 0.0
        %v1170 = vmax.f32 %v1138, 0.0
        %v1171 = vmax.f32 %v1139, 0.0
        %v1172 = vmax.f32 %v1140, 0.0
        %v1173 = vmax.f32 %v1141, 0.0
        %v1174 = vmax.f32 %v1142, 0.0
        %v1175 = vmax.f32 %v1143, 0.0
        %v1176 = vmax.f32 %v1144, 0.0
        %v1177 = vmax.f32 %v1145, 0.0
        %v1178 = vmax.f32 %v1146, 0.0
        %v1179 = vmax.f32 %v1147, 0.0
        %v1180 = vmax.f32 %v1148, 0.0
        %v1181 = vmax.f32 %v1149, 0.0
        %vm1182 = vcmp.ne.f32.partialorder %v1118, %v1118
        %vm1183 = vcmp.ne.f32.partialorder %v1119, %v1119
        %vm1184 = vcmp.ne.f32.partialorder %v1120, %v1120
        %vm1185 = vcmp.ne.f32.partialorder %v1121, %v1121
        %vm1186 = vcmp.ne.f32.partialorder %v1122, %v1122
        %vm1187 = vcmp.ne.f32.partialorder %v1123, %v1123
        %vm1188 = vcmp.ne.f32.partialorder %v1124, %v1124
        %vm1189 = vcmp.ne.f32.partialorder %v1125, %v1125
        %vm1190 = vcmp.ne.f32.partialorder %v1126, %v1126
        %vm1191 = vcmp.ne.f32.partialorder %v1127, %v1127
        %vm1192 = vcmp.ne.f32.partialorder %v1128, %v1128
        %vm1193 = vcmp.ne.f32.partialorder %v1129, %v1129
        %vm1194 = vcmp.ne.f32.partialorder %v1130, %v1130
        %vm1195 = vcmp.ne.f32.partialorder %v1131, %v1131
        %vm1196 = vcmp.ne.f32.partialorder %v1132, %v1132
        %vm1197 = vcmp.ne.f32.partialorder %v1133, %v1133
        %vm1198 = vcmp.ne.f32.partialorder %v1134, %v1134
        %vm1199 = vcmp.ne.f32.partialorder %v1135, %v1135
        %vm1200 = vcmp.ne.f32.partialorder %v1136, %v1136
        %vm1201 = vcmp.ne.f32.partialorder %v1137, %v1137
        %vm1202 = vcmp.ne.f32.partialorder %v1138, %v1138
        %vm1203 = vcmp.ne.f32.partialorder %v1139, %v1139
        %vm1204 = vcmp.ne.f32.partialorder %v1140, %v1140
        %vm1205 = vcmp.ne.f32.partialorder %v1141, %v1141
        %vm1206 = vcmp.ne.f32.partialorder %v1142, %v1142
        %vm1207 = vcmp.ne.f32.partialorder %v1143, %v1143
        %vm1208 = vcmp.ne.f32.partialorder %v1144, %v1144
        %vm1209 = vcmp.ne.f32.partialorder %v1145, %v1145
        %vm1210 = vcmp.ne.f32.partialorder %v1146, %v1146
        %vm1211 = vcmp.ne.f32.partialorder %v1147, %v1147
        %vm1212 = vcmp.ne.f32.partialorder %v1148, %v1148
        %vm1213 = vcmp.ne.f32.partialorder %v1149, %v1149
        %v1214 = vadd.f32 %v1118, 0.0
        %v1215 = vadd.f32 %v1119, 0.0
        %v1216 = vadd.f32 %v1120, 0.0
        %v1217 = vadd.f32 %v1121, 0.0
        %v1218 = vadd.f32 %v1122, 0.0
        %v1219 = vadd.f32 %v1123, 0.0
        %v1220 = vadd.f32 %v1124, 0.0
        %v1221 = vadd.f32 %v1125, 0.0
        %v1222 = vadd.f32 %v1126, 0.0
        %v1223 = vadd.f32 %v1127, 0.0
        %v1224 = vadd.f32 %v1128, 0.0
        %v1225 = vadd.f32 %v1129, 0.0
        %v1226 = vadd.f32 %v1130, 0.0
        %v1227 = vadd.f32 %v1131, 0.0
        %v1228 = vadd.f32 %v1132, 0.0
        %v1229 = vadd.f32 %v1133, 0.0
        %v1230 = vadd.f32 %v1134, 0.0
        %v1231 = vadd.f32 %v1135, 0.0
        %v1232 = vadd.f32 %v1136, 0.0
        %v1233 = vadd.f32 %v1137, 0.0
        %v1234 = vadd.f32 %v1138, 0.0
        %v1235 = vadd.f32 %v1139, 0.0
        %v1236 = vadd.f32 %v1140, 0.0
        %v1237 = vadd.f32 %v1141, 0.0
        %v1238 = vadd.f32 %v1142, 0.0
        %v1239 = vadd.f32 %v1143, 0.0
        %v1240 = vadd.f32 %v1144, 0.0
        %v1241 = vadd.f32 %v1145, 0.0
        %v1242 = vadd.f32 %v1146, 0.0
        %v1243 = vadd.f32 %v1147, 0.0
        %v1244 = vadd.f32 %v1148, 0.0
        %v1245 = vadd.f32 %v1149, 0.0
        %v1246 = vand.u32 2147483647, %v1118
        %v1247 = vand.u32 2147483647, %v1119
        %v1248 = vand.u32 2147483647, %v1120
        %v1249 = vand.u32 2147483647, %v1121
        %v1250 = vand.u32 2147483647, %v1122
        %v1251 = vand.u32 2147483647, %v1123
        %v1252 = vand.u32 2147483647, %v1124
        %v1253 = vand.u32 2147483647, %v1125
        %v1254 = vand.u32 2147483647, %v1126
        %v1255 = vand.u32 2147483647, %v1127
        %v1256 = vand.u32 2147483647, %v1128
        %v1257 = vand.u32 2147483647, %v1129
        %v1258 = vand.u32 2147483647, %v1130
        %v1259 = vand.u32 2147483647, %v1131
        %v1260 = vand.u32 2147483647, %v1132
        %v1261 = vand.u32 2147483647, %v1133
        %v1262 = vand.u32 2147483647, %v1134
        %v1263 = vand.u32 2147483647, %v1135
        %v1264 = vand.u32 2147483647, %v1136
        %v1265 = vand.u32 2147483647, %v1137
        %v1266 = vand.u32 2147483647, %v1138
        %v1267 = vand.u32 2147483647, %v1139
        %v1268 = vand.u32 2147483647, %v1140
        %v1269 = vand.u32 2147483647, %v1141
        %v1270 = vand.u32 2147483647, %v1142
        %v1271 = vand.u32 2147483647, %v1143
        %v1272 = vand.u32 2147483647, %v1144
        %v1273 = vand.u32 2147483647, %v1145
        %v1274 = vand.u32 2147483647, %v1146
        %v1275 = vand.u32 2147483647, %v1147
        %v1276 = vand.u32 2147483647, %v1148
        %v1277 = vand.u32 2147483647, %v1149
        %v1278 = vsub.f32 0.0, %v1246
        %v1279 = vsub.f32 0.0, %v1247
        %v1280 = vsub.f32 0.0, %v1248
        %v1281 = vsub.f32 0.0, %v1249
        %v1282 = vsub.f32 0.0, %v1250
        %v1283 = vsub.f32 0.0, %v1251
        %v1284 = vsub.f32 0.0, %v1252
        %v1285 = vsub.f32 0.0, %v1253
        %v1286 = vsub.f32 0.0, %v1254
        %v1287 = vsub.f32 0.0, %v1255
        %v1288 = vsub.f32 0.0, %v1256
        %v1289 = vsub.f32 0.0, %v1257
        %v1290 = vsub.f32 0.0, %v1258
        %v1291 = vsub.f32 0.0, %v1259
        %v1292 = vsub.f32 0.0, %v1260
        %v1293 = vsub.f32 0.0, %v1261
        %v1294 = vsub.f32 0.0, %v1262
        %v1295 = vsub.f32 0.0, %v1263
        %v1296 = vsub.f32 0.0, %v1264
        %v1297 = vsub.f32 0.0, %v1265
        %v1298 = vsub.f32 0.0, %v1266
        %v1299 = vsub.f32 0.0, %v1267
        %v1300 = vsub.f32 0.0, %v1268
        %v1301 = vsub.f32 0.0, %v1269
        %v1302 = vsub.f32 0.0, %v1270
        %v1303 = vsub.f32 0.0, %v1271
        %v1304 = vsub.f32 0.0, %v1272
        %v1305 = vsub.f32 0.0, %v1273
        %v1306 = vsub.f32 0.0, %v1274
        %v1307 = vsub.f32 0.0, %v1275
        %v1308 = vsub.f32 0.0, %v1276
        %v1309 = vsub.f32 0.0, %v1277
        %v1310 = vmul.f32 %v1278, 1.442695
        %v1311 = vpow.pop %v1310
        %v1312 = vmul.f32 %v1279, 1.442695
        %v1313 = vpow.pop %v1312
        %v1314 = vmul.f32 %v1280, 1.442695
        %v1315 = vpow.pop %v1314
        %v1316 = vmul.f32 %v1281, 1.442695
        %v1317 = vpow.pop %v1316
        %v1318 = vmul.f32 %v1282, 1.442695
        %v1319 = vpow.pop %v1318
        %v1320 = vmul.f32 %v1283, 1.442695
        %v1321 = vpow.pop %v1320
        %v1322 = vmul.f32 %v1284, 1.442695
        %v1323 = vpow.pop %v1322
        %v1324 = vmul.f32 %v1285, 1.442695
        %v1325 = vpow.pop %v1324
        %v1326 = vmul.f32 %v1286, 1.442695
        %v1327 = vpow.pop %v1326
        %v1328 = vmul.f32 %v1287, 1.442695
        %v1329 = vpow.pop %v1328
        %v1330 = vmul.f32 %v1288, 1.442695
        %v1331 = vpow.pop %v1330
        %v1332 = vmul.f32 %v1289, 1.442695
        %v1333 = vpow.pop %v1332
        %v1334 = vmul.f32 %v1290, 1.442695
        %v1335 = vpow.pop %v1334
        %v1336 = vmul.f32 %v1291, 1.442695
        %v1337 = vpow.pop %v1336
        %v1338 = vmul.f32 %v1292, 1.442695
        %v1339 = vpow.pop %v1338
        %v1340 = vmul.f32 %v1293, 1.442695
        %v1341 = vpow.pop %v1340
        %v1342 = vmul.f32 %v1294, 1.442695
        %v1343 = vpow.pop %v1342
        %v1344 = vmul.f32 %v1295, 1.442695
        %v1345 = vpow.pop %v1344
        %v1346 = vmul.f32 %v1296, 1.442695
        %v1347 = vpow.pop %v1346
        %v1348 = vmul.f32 %v1297, 1.442695
        %v1349 = vpow.pop %v1348
        %v1350 = vmul.f32 %v1298, 1.442695
        %v1351 = vpow.pop %v1350
        %v1352 = vmul.f32 %v1299, 1.442695
        %v1353 = vpow.pop %v1352
        %v1354 = vmul.f32 %v1300, 1.442695
        %v1355 = vpow.pop %v1354
        %v1356 = vmul.f32 %v1301, 1.442695
        %v1357 = vpow.pop %v1356
        %v1358 = vmul.f32 %v1302, 1.442695
        %v1359 = vpow.pop %v1358
        %v1360 = vmul.f32 %v1303, 1.442695
        %v1361 = vpow.pop %v1360
        %v1362 = vmul.f32 %v1304, 1.442695
        %v1363 = vpow.pop %v1362
        %v1364 = vmul.f32 %v1305, 1.442695
        %v1365 = vpow.pop %v1364
        %v1366 = vmul.f32 %v1306, 1.442695
        %v1367 = vpow.pop %v1366
        %v1368 = vmul.f32 %v1307, 1.442695
        %v1369 = vpow.pop %v1368
        %v1370 = vmul.f32 %v1308, 1.442695
        %v1371 = vpow.pop %v1370
        %v1372 = vmul.f32 %v1309, 1.442695
        %v1373 = vpow.pop %v1372
        %v1374 = vadd.f32 %v1311, 1.0
        %v1375 = vlog2.pop %v1374
        %v1376 = vmul.f32 %v1375, 0.6931472
        %v1377 = vmul.f32 -0.5, %v1311
        %v1378 = vadd.f32 %v1377, 1.0
        %v1379 = vmul.f32 %v1378, %v1311
        %v1380 = vand.u32 2147483647, %v1311
        %vm1381 = vcmp.lt.f32.partialorder %v1380, 0.0004427343
        %v1382 = vsel %vm1381, %v1379, %v1376
        %v1383 = vadd.f32 %v1313, 1.0
        %v1384 = vlog2.pop %v1383
        %v1385 = vmul.f32 %v1384, 0.6931472
        %v1386 = vmul.f32 -0.5, %v1313
        %v1387 = vadd.f32 %v1386, 1.0
        %v1388 = vmul.f32 %v1387, %v1313
        %v1389 = vand.u32 2147483647, %v1313
        %vm1390 = vcmp.lt.f32.partialorder %v1389, 0.0004427343
        %v1391 = vsel %vm1390, %v1388, %v1385
        %v1392 = vadd.f32 %v1315, 1.0
        %v1393 = vlog2.pop %v1392
        %v1394 = vmul.f32 %v1393, 0.6931472
        %v1395 = vmul.f32 -0.5, %v1315
        %v1396 = vadd.f32 %v1395, 1.0
        %v1397 = vmul.f32 %v1396, %v1315
        %v1398 = vand.u32 2147483647, %v1315
        %vm1399 = vcmp.lt.f32.partialorder %v1398, 0.0004427343
        %v1400 = vsel %vm1399, %v1397, %v1394
        %v1401 = vadd.f32 %v1317, 1.0
        %v1402 = vlog2.pop %v1401
        %v1403 = vmul.f32 %v1402, 0.6931472
        %v1404 = vmul.f32 -0.5, %v1317
        %v1405 = vadd.f32 %v1404, 1.0
        %v1406 = vmul.f32 %v1405, %v1317
        %v1407 = vand.u32 2147483647, %v1317
        %vm1408 = vcmp.lt.f32.partialorder %v1407, 0.0004427343
        %v1409 = vsel %vm1408, %v1406, %v1403
        %v1410 = vadd.f32 %v1319, 1.0
        %v1411 = vlog2.pop %v1410
        %v1412 = vmul.f32 %v1411, 0.6931472
        %v1413 = vmul.f32 -0.5, %v1319
        %v1414 = vadd.f32 %v1413, 1.0
        %v1415 = vmul.f32 %v1414, %v1319
        %v1416 = vand.u32 2147483647, %v1319
        %vm1417 = vcmp.lt.f32.partialorder %v1416, 0.0004427343
        %v1418 = vsel %vm1417, %v1415, %v1412
        %v1419 = vadd.f32 %v1321, 1.0
        %v1420 = vlog2.pop %v1419
        %v1421 = vmul.f32 %v1420, 0.6931472
        %v1422 = vmul.f32 -0.5, %v1321
        %v1423 = vadd.f32 %v1422, 1.0
        %v1424 = vmul.f32 %v1423, %v1321
        %v1425 = vand.u32 2147483647, %v1321
        %vm1426 = vcmp.lt.f32.partialorder %v1425, 0.0004427343
        %v1427 = vsel %vm1426, %v1424, %v1421
        %v1428 = vadd.f32 %v1323, 1.0
        %v1429 = vlog2.pop %v1428
        %v1430 = vmul.f32 %v1429, 0.6931472
        %v1431 = vmul.f32 -0.5, %v1323
        %v1432 = vadd.f32 %v1431, 1.0
        %v1433 = vmul.f32 %v1432, %v1323
        %v1434 = vand.u32 2147483647, %v1323
        %vm1435 = vcmp.lt.f32.partialorder %v1434, 0.0004427343
        %v1436 = vsel %vm1435, %v1433, %v1430
        %v1437 = vadd.f32 %v1325, 1.0
        %v1438 = vlog2.pop %v1437
        %v1439 = vmul.f32 %v1438, 0.6931472
        %v1440 = vmul.f32 -0.5, %v1325
        %v1441 = vadd.f32 %v1440, 1.0
        %v1442 = vmul.f32 %v1441, %v1325
        %v1443 = vand.u32 2147483647, %v1325
        %vm1444 = vcmp.lt.f32.partialorder %v1443, 0.0004427343
        %v1445 = vsel %vm1444, %v1442, %v1439
        %v1446 = vadd.f32 %v1327, 1.0
        %v1447 = vlog2.pop %v1446
        %v1448 = vmul.f32 %v1447, 0.6931472
        %v1449 = vmul.f32 -0.5, %v1327
        %v1450 = vadd.f32 %v1449, 1.0
        %v1451 = vmul.f32 %v1450, %v1327
        %v1452 = vand.u32 2147483647, %v1327
        %vm1453 = vcmp.lt.f32.partialorder %v1452, 0.0004427343
        %v1454 = vsel %vm1453, %v1451, %v1448
        %v1455 = vadd.f32 %v1329, 1.0
        %v1456 = vlog2.pop %v1455
        %v1457 = vmul.f32 %v1456, 0.6931472
        %v1458 = vmul.f32 -0.5, %v1329
        %v1459 = vadd.f32 %v1458, 1.0
        %v1460 = vmul.f32 %v1459, %v1329
        %v1461 = vand.u32 2147483647, %v1329
        %vm1462 = vcmp.lt.f32.partialorder %v1461, 0.0004427343
        %v1463 = vsel %vm1462, %v1460, %v1457
        %v1464 = vadd.f32 %v1331, 1.0
        %v1465 = vlog2.pop %v1464
        %v1466 = vmul.f32 %v1465, 0.6931472
        %v1467 = vmul.f32 -0.5, %v1331
        %v1468 = vadd.f32 %v1467, 1.0
        %v1469 = vmul.f32 %v1468, %v1331
        %v1470 = vand.u32 2147483647, %v1331
        %vm1471 = vcmp.lt.f32.partialorder %v1470, 0.0004427343
        %v1472 = vsel %vm1471, %v1469, %v1466
        %v1473 = vadd.f32 %v1333, 1.0
        %v1474 = vlog2.pop %v1473
        %v1475 = vmul.f32 %v1474, 0.6931472
        %v1476 = vmul.f32 -0.5, %v1333
        %v1477 = vadd.f32 %v1476, 1.0
        %v1478 = vmul.f32 %v1477, %v1333
        %v1479 = vand.u32 2147483647, %v1333
        %vm1480 = vcmp.lt.f32.partialorder %v1479, 0.0004427343
        %v1481 = vsel %vm1480, %v1478, %v1475
        %v1482 = vadd.f32 %v1335, 1.0
        %v1483 = vlog2.pop %v1482
        %v1484 = vmul.f32 %v1483, 0.6931472
        %v1485 = vmul.f32 -0.5, %v1335
        %v1486 = vadd.f32 %v1485, 1.0
        %v1487 = vmul.f32 %v1486, %v1335
        %v1488 = vand.u32 2147483647, %v1335
        %vm1489 = vcmp.lt.f32.partialorder %v1488, 0.0004427343
        %v1490 = vsel %vm1489, %v1487, %v1484
        %v1491 = vadd.f32 %v1337, 1.0
        %v1492 = vlog2.pop %v1491
        %v1493 = vmul.f32 %v1492, 0.6931472
        %v1494 = vmul.f32 -0.5, %v1337
        %v1495 = vadd.f32 %v1494, 1.0
        %v1496 = vmul.f32 %v1495, %v1337
        %v1497 = vand.u32 2147483647, %v1337
        %vm1498 = vcmp.lt.f32.partialorder %v1497, 0.0004427343
        %v1499 = vsel %vm1498, %v1496, %v1493
        %v1500 = vadd.f32 %v1339, 1.0
        %v1501 = vlog2.pop %v1500
        %v1502 = vmul.f32 %v1501, 0.6931472
        %v1503 = vmul.f32 -0.5, %v1339
        %v1504 = vadd.f32 %v1503, 1.0
        %v1505 = vmul.f32 %v1504, %v1339
        %v1506 = vand.u32 2147483647, %v1339
        %vm1507 = vcmp.lt.f32.partialorder %v1506, 0.0004427343
        %v1508 = vsel %vm1507, %v1505, %v1502
        %v1509 = vadd.f32 %v1341, 1.0
        %v1510 = vlog2.pop %v1509
        %v1511 = vmul.f32 %v1510, 0.6931472
        %v1512 = vmul.f32 -0.5, %v1341
        %v1513 = vadd.f32 %v1512, 1.0
        %v1514 = vmul.f32 %v1513, %v1341
        %v1515 = vand.u32 2147483647, %v1341
        %vm1516 = vcmp.lt.f32.partialorder %v1515, 0.0004427343
        %v1517 = vsel %vm1516, %v1514, %v1511
        %v1518 = vadd.f32 %v1343, 1.0
        %v1519 = vlog2.pop %v1518
        %v1520 = vmul.f32 %v1519, 0.6931472
        %v1521 = vmul.f32 -0.5, %v1343
        %v1522 = vadd.f32 %v1521, 1.0
        %v1523 = vmul.f32 %v1522, %v1343
        %v1524 = vand.u32 2147483647, %v1343
        %vm1525 = vcmp.lt.f32.partialorder %v1524, 0.0004427343
        %v1526 = vsel %vm1525, %v1523, %v1520
        %v1527 = vadd.f32 %v1345, 1.0
        %v1528 = vlog2.pop %v1527
        %v1529 = vmul.f32 %v1528, 0.6931472
        %v1530 = vmul.f32 -0.5, %v1345
        %v1531 = vadd.f32 %v1530, 1.0
        %v1532 = vmul.f32 %v1531, %v1345
        %v1533 = vand.u32 2147483647, %v1345
        %vm1534 = vcmp.lt.f32.partialorder %v1533, 0.0004427343
        %v1535 = vsel %vm1534, %v1532, %v1529
        %v1536 = vadd.f32 %v1347, 1.0
        %v1537 = vlog2.pop %v1536
        %v1538 = vmul.f32 %v1537, 0.6931472
        %v1539 = vmul.f32 -0.5, %v1347
        %v1540 = vadd.f32 %v1539, 1.0
        %v1541 = vmul.f32 %v1540, %v1347
        %v1542 = vand.u32 2147483647, %v1347
        %vm1543 = vcmp.lt.f32.partialorder %v1542, 0.0004427343
        %v1544 = vsel %vm1543, %v1541, %v1538
        %v1545 = vadd.f32 %v1349, 1.0
        %v1546 = vlog2.pop %v1545
        %v1547 = vmul.f32 %v1546, 0.6931472
        %v1548 = vmul.f32 -0.5, %v1349
        %v1549 = vadd.f32 %v1548, 1.0
        %v1550 = vmul.f32 %v1549, %v1349
        %v1551 = vand.u32 2147483647, %v1349
        %vm1552 = vcmp.lt.f32.partialorder %v1551, 0.0004427343
        %v1553 = vsel %vm1552, %v1550, %v1547
        %v1554 = vadd.f32 %v1351, 1.0
        %v1555 = vlog2.pop %v1554
        %v1556 = vmul.f32 %v1555, 0.6931472
        %v1557 = vmul.f32 -0.5, %v1351
        %v1558 = vadd.f32 %v1557, 1.0
        %v1559 = vmul.f32 %v1558, %v1351
        %v1560 = vand.u32 2147483647, %v1351
        %vm1561 = vcmp.lt.f32.partialorder %v1560, 0.0004427343
        %v1562 = vsel %vm1561, %v1559, %v1556
        %v1563 = vadd.f32 %v1353, 1.0
        %v1564 = vlog2.pop %v1563
        %v1565 = vmul.f32 %v1564, 0.6931472
        %v1566 = vmul.f32 -0.5, %v1353
        %v1567 = vadd.f32 %v1566, 1.0
        %v1568 = vmul.f32 %v1567, %v1353
        %v1569 = vand.u32 2147483647, %v1353
        %vm1570 = vcmp.lt.f32.partialorder %v1569, 0.0004427343
        %v1571 = vsel %vm1570, %v1568, %v1565
        %v1572 = vadd.f32 %v1355, 1.0
        %v1573 = vlog2.pop %v1572
        %v1574 = vmul.f32 %v1573, 0.6931472
        %v1575 = vmul.f32 -0.5, %v1355
        %v1576 = vadd.f32 %v1575, 1.0
        %v1577 = vmul.f32 %v1576, %v1355
        %v1578 = vand.u32 2147483647, %v1355
        %vm1579 = vcmp.lt.f32.partialorder %v1578, 0.0004427343
        %v1580 = vsel %vm1579, %v1577, %v1574
        %v1581 = vadd.f32 %v1357, 1.0
        %v1582 = vlog2.pop %v1581
        %v1583 = vmul.f32 %v1582, 0.6931472
        %v1584 = vmul.f32 -0.5, %v1357
        %v1585 = vadd.f32 %v1584, 1.0
        %v1586 = vmul.f32 %v1585, %v1357
        %v1587 = vand.u32 2147483647, %v1357
        %vm1588 = vcmp.lt.f32.partialorder %v1587, 0.0004427343
        %v1589 = vsel %vm1588, %v1586, %v1583
        %v1590 = vadd.f32 %v1359, 1.0
        %v1591 = vlog2.pop %v1590
        %v1592 = vmul.f32 %v1591, 0.6931472
        %v1593 = vmul.f32 -0.5, %v1359
        %v1594 = vadd.f32 %v1593, 1.0
        %v1595 = vmul.f32 %v1594, %v1359
        %v1596 = vand.u32 2147483647, %v1359
        %vm1597 = vcmp.lt.f32.partialorder %v1596, 0.0004427343
        %v1598 = vsel %vm1597, %v1595, %v1592
        %v1599 = vadd.f32 %v1361, 1.0
        %v1600 = vlog2.pop %v1599
        %v1601 = vmul.f32 %v1600, 0.6931472
        %v1602 = vmul.f32 -0.5, %v1361
        %v1603 = vadd.f32 %v1602, 1.0
        %v1604 = vmul.f32 %v1603, %v1361
        %v1605 = vand.u32 2147483647, %v1361
        %vm1606 = vcmp.lt.f32.partialorder %v1605, 0.0004427343
        %v1607 = vsel %vm1606, %v1604, %v1601
        %v1608 = vadd.f32 %v1363, 1.0
        %v1609 = vlog2.pop %v1608
        %v1610 = vmul.f32 %v1609, 0.6931472
        %v1611 = vmul.f32 -0.5, %v1363
        %v1612 = vadd.f32 %v1611, 1.0
        %v1613 = vmul.f32 %v1612, %v1363
        %v1614 = vand.u32 2147483647, %v1363
        %vm1615 = vcmp.lt.f32.partialorder %v1614, 0.0004427343
        %v1616 = vsel %vm1615, %v1613, %v1610
        %v1617 = vadd.f32 %v1365, 1.0
        %v1618 = vlog2.pop %v1617
        %v1619 = vmul.f32 %v1618, 0.6931472
        %v1620 = vmul.f32 -0.5, %v1365
        %v1621 = vadd.f32 %v1620, 1.0
        %v1622 = vmul.f32 %v1621, %v1365
        %v1623 = vand.u32 2147483647, %v1365
        %vm1624 = vcmp.lt.f32.partialorder %v1623, 0.0004427343
        %v1625 = vsel %vm1624, %v1622, %v1619
        %v1626 = vadd.f32 %v1367, 1.0
        %v1627 = vlog2.pop %v1626
        %v1628 = vmul.f32 %v1627, 0.6931472
        %v1629 = vmul.f32 -0.5, %v1367
        %v1630 = vadd.f32 %v1629, 1.0
        %v1631 = vmul.f32 %v1630, %v1367
        %v1632 = vand.u32 2147483647, %v1367
        %vm1633 = vcmp.lt.f32.partialorder %v1632, 0.0004427343
        %v1634 = vsel %vm1633, %v1631, %v1628
        %v1635 = vadd.f32 %v1369, 1.0
        %v1636 = vlog2.pop %v1635
        %v1637 = vmul.f32 %v1636, 0.6931472
        %v1638 = vmul.f32 -0.5, %v1369
        %v1639 = vadd.f32 %v1638, 1.0
        %v1640 = vmul.f32 %v1639, %v1369
        %v1641 = vand.u32 2147483647, %v1369
        %vm1642 = vcmp.lt.f32.partialorder %v1641, 0.0004427343
        %v1643 = vsel %vm1642, %v1640, %v1637
        %v1644 = vadd.f32 %v1371, 1.0
        %v1645 = vlog2.pop %v1644
        %v1646 = vmul.f32 %v1645, 0.6931472
        %v1647 = vmul.f32 -0.5, %v1371
        %v1648 = vadd.f32 %v1647, 1.0
        %v1649 = vmul.f32 %v1648, %v1371
        %v1650 = vand.u32 2147483647, %v1371
        %vm1651 = vcmp.lt.f32.partialorder %v1650, 0.0004427343
        %v1652 = vsel %vm1651, %v1649, %v1646
        %v1653 = vadd.f32 %v1373, 1.0
        %v1654 = vlog2.pop %v1653
        %v1655 = vmul.f32 %v1654, 0.6931472
        %v1656 = vmul.f32 -0.5, %v1373
        %v1657 = vadd.f32 %v1656, 1.0
        %v1658 = vmul.f32 %v1657, %v1373
        %v1659 = vand.u32 2147483647, %v1373
        %vm1660 = vcmp.lt.f32.partialorder %v1659, 0.0004427343
        %v1661 = vsel %vm1660, %v1658, %v1655
        %v1662 = vadd.f32 %v1150, %v1382
        %v1663 = vadd.f32 %v1151, %v1391
        %v1664 = vadd.f32 %v1152, %v1400
        %v1665 = vadd.f32 %v1153, %v1409
        %v1666 = vadd.f32 %v1154, %v1418
        %v1667 = vadd.f32 %v1155, %v1427
        %v1668 = vadd.f32 %v1156, %v1436
        %v1669 = vadd.f32 %v1157, %v1445
        %v1670 = vadd.f32 %v1158, %v1454
        %v1671 = vadd.f32 %v1159, %v1463
        %v1672 = vadd.f32 %v1160, %v1472
        %v1673 = vadd.f32 %v1161, %v1481
        %v1674 = vadd.f32 %v1162, %v1490
        %v1675 = vadd.f32 %v1163, %v1499
        %v1676 = vadd.f32 %v1164, %v1508
        %v1677 = vadd.f32 %v1165, %v1517
        %v1678 = vadd.f32 %v1166, %v1526
        %v1679 = vadd.f32 %v1167, %v1535
        %v1680 = vadd.f32 %v1168, %v1544
        %v1681 = vadd.f32 %v1169, %v1553
        %v1682 = vadd.f32 %v1170, %v1562
        %v1683 = vadd.f32 %v1171, %v1571
        %v1684 = vadd.f32 %v1172, %v1580
        %v1685 = vadd.f32 %v1173, %v1589
        %v1686 = vadd.f32 %v1174, %v1598
        %v1687 = vadd.f32 %v1175, %v1607
        %v1688 = vadd.f32 %v1176, %v1616
        %v1689 = vadd.f32 %v1177, %v1625
        %v1690 = vadd.f32 %v1178, %v1634
        %v1691 = vadd.f32 %v1179, %v1643
        %v1692 = vadd.f32 %v1180, %v1652
        %v1693 = vadd.f32 %v1181, %v1661
        %v1694 = vsel %vm1182, %v1214, %v1662
        %v1695 = vsel %vm1183, %v1215, %v1663
        %v1696 = vsel %vm1184, %v1216, %v1664
        %v1697 = vsel %vm1185, %v1217, %v1665
        %v1698 = vsel %vm1186, %v1218, %v1666
        %v1699 = vsel %vm1187, %v1219, %v1667
        %v1700 = vsel %vm1188, %v1220, %v1668
        %v1701 = vsel %vm1189, %v1221, %v1669
        %v1702 = vsel %vm1190, %v1222, %v1670
        %v1703 = vsel %vm1191, %v1223, %v1671
        %v1704 = vsel %vm1192, %v1224, %v1672
        %v1705 = vsel %vm1193, %v1225, %v1673
        %v1706 = vsel %vm1194, %v1226, %v1674
        %v1707 = vsel %vm1195, %v1227, %v1675
        %v1708 = vsel %vm1196, %v1228, %v1676
        %v1709 = vsel %vm1197, %v1229, %v1677
        %v1710 = vsel %vm1198, %v1230, %v1678
        %v1711 = vsel %vm1199, %v1231, %v1679
        %v1712 = vsel %vm1200, %v1232, %v1680
        %v1713 = vsel %vm1201, %v1233, %v1681
        %v1714 = vsel %vm1202, %v1234, %v1682
        %v1715 = vsel %vm1203, %v1235, %v1683
        %v1716 = vsel %vm1204, %v1236, %v1684
        %v1717 = vsel %vm1205, %v1237, %v1685
        %v1718 = vsel %vm1206, %v1238, %v1686
        %v1719 = vsel %vm1207, %v1239, %v1687
        %v1720 = vsel %vm1208, %v1240, %v1688
        %v1721 = vsel %vm1209, %v1241, %v1689
        %v1722 = vsel %vm1210, %v1242, %v1690
        %v1723 = vsel %vm1211, %v1243, %v1691
        %v1724 = vsel %vm1212, %v1244, %v1692
        %v1725 = vsel %vm1213, %v1245, %v1693
        %v1726 = vld [vmem:[%s7] sm:$0xf]
        %v1727 = vld [vmem:[%s8] sm:$0x1]
        %v1729 = vlaneseq
        %v1730 = vshrl.u32 %v1729, 7
        %v1731 = vsub.s32 0, %v1730
        %v1732 = vrot.slane %v1727, %v1731
        %v1735 = vsel %vm472, %v1726, 0
        %1737 = vmatprep.subr.mxu0 0.0
        %1738 = vmatpush1.msra.mxu0 0.0
        %1739 = vmatprep.subr.mxu0 0.0
        %1740 = vmatpush1.msra.mxu0 0.0
        %1741 = vmatprep.subr.mxu0 0.0
        %1742 = vmatpush1.msra.mxu0 0.0
        %1743 = vmatprep.subr.mxu0 0.0
        %1744 = vmatpush1.msra.mxu0 0.0
        %1745 = vmatprep.subr.mxu0 0.0
        %1746 = vmatpush1.msra.mxu0 0.0
        %1747 = vmatprep.subr.mxu0 0.0
        %1748 = vmatpush1.msra.mxu0 0.0
        %1749 = vmatprep.subr.mxu0 0.0
        %1750 = vmatpush1.msra.mxu0 0.0
        %1751 = vmatprep.subr.mxu0 0.0
        %1752 = vmatpush1.msra.mxu0 0.0
        %1753 = vmatprep.subr.mxu0 0.0
        %1754 = vmatpush1.msra.mxu0 0.0
        %1755 = vmatprep.subr.mxu0 0.0
        %1756 = vmatpush1.msra.mxu0 0.0
        %1757 = vmatprep.subr.mxu0 0.0
        %1758 = vmatpush1.msra.mxu0 0.0
        %1759 = vmatprep.subr.mxu0 0.0
        %1760 = vmatpush1.msra.mxu0 0.0
        %1761 = vmatprep.subr.mxu0 0.0
        %1762 = vmatpush1.msra.mxu0 0.0
        %1763 = vmatprep.subr.mxu0 0.0
        %1764 = vmatpush1.msra.mxu0 0.0
        %1765 = vmatprep.subr.mxu0 0.0
        %1766 = vmatpush1.msra.mxu0 0.0
        %1767 = vmatprep.subr.mxu0 0.0
        %1768 = vmatpush1.msra.mxu0 %v1735
        %1769 = vmatprep.subr.mxu0 0.0
        %1770 = vmatpush2.msra.mxu0 0.0
        %1771 = vmatprep.subr.mxu0 0.0
        %1772 = vmatpush2.msra.mxu0 0.0
        %1773 = vmatprep.subr.mxu0 0.0
        %1774 = vmatpush2.msra.mxu0 0.0
        %1775 = vmatprep.subr.mxu0 0.0
        %1776 = vmatpush2.msra.mxu0 0.0
        %1777 = vmatprep.subr.mxu0 0.0
        %1778 = vmatpush2.msra.mxu0 0.0
        %1779 = vmatprep.subr.mxu0 0.0
        %1780 = vmatpush2.msra.mxu0 0.0
        %1781 = vmatprep.subr.mxu0 0.0
        %1782 = vmatpush2.msra.mxu0 0.0
        %1783 = vmatprep.subr.mxu0 0.0
        %1784 = vmatpush2.msra.mxu0 0.0
        %1785 = vmatprep.subr.mxu0 0.0
        %1786 = vmatpush2.msra.mxu0 0.0
        %1787 = vmatprep.subr.mxu0 0.0
        %1788 = vmatpush2.msra.mxu0 0.0
        %1789 = vmatprep.subr.mxu0 0.0
        %1790 = vmatpush2.msra.mxu0 0.0
        %1791 = vmatprep.subr.mxu0 0.0
        %1792 = vmatpush2.msra.mxu0 0.0
        %1793 = vmatprep.subr.mxu0 0.0
        %1794 = vmatpush2.msra.mxu0 0.0
        %1795 = vmatprep.subr.mxu0 0.0
        %1796 = vmatpush2.msra.mxu0 0.0
        %1797 = vmatprep.subr.mxu0 0.0
        %1798 = vmatpush2.msra.mxu0 0.0
        %1799 = vmatprep.subr.mxu0 0.0
        %1800 = vmatpush2.msra.mxu0 0.0
        %1801 = vmatprep.mubr.f32.mxu0 0.0
        %1802 = vmatmul.mubr.f32.gmra.mxu0 %v377
        %v1803 = vpop.f32.mrf.mxu0
        %v1804 = vadd.f32 %v1732, %v1803
        %v1805 = vpop.f32.mrf.mxu0
        %1806 = vmatprep.mubr.f32.mxu0 0.0
        %1807 = vmatmul.mubr.f32.gmra.mxu0 %v380
        %v1808 = vpop.f32.mrf.mxu0
        %v1809 = vadd.f32 %v1732, %v1808
        %v1810 = vpop.f32.mrf.mxu0
        %1811 = vmatprep.mubr.f32.mxu0 0.0
        %1812 = vmatmul.mubr.f32.gmra.mxu0 %v383
        %v1813 = vpop.f32.mrf.mxu0
        %v1814 = vadd.f32 %v1732, %v1813
        %v1815 = vpop.f32.mrf.mxu0
        %1816 = vmatprep.mubr.f32.mxu0 0.0
        %1817 = vmatmul.mubr.f32.gmra.mxu0 %v386
        %v1818 = vpop.f32.mrf.mxu0
        %v1819 = vadd.f32 %v1732, %v1818
        %v1820 = vpop.f32.mrf.mxu0
        %1821 = vmatprep.mubr.f32.mxu0 0.0
        %1822 = vmatmul.mubr.f32.gmra.mxu0 %v389
        %v1823 = vpop.f32.mrf.mxu0
        %v1824 = vadd.f32 %v1732, %v1823
        %v1825 = vpop.f32.mrf.mxu0
        %1826 = vmatprep.mubr.f32.mxu0 0.0
        %1827 = vmatmul.mubr.f32.gmra.mxu0 %v392
        %v1828 = vpop.f32.mrf.mxu0
        %v1829 = vadd.f32 %v1732, %v1828
        %v1830 = vpop.f32.mrf.mxu0
        %1831 = vmatprep.mubr.f32.mxu0 0.0
        %1832 = vmatmul.mubr.f32.gmra.mxu0 %v395
        %v1833 = vpop.f32.mrf.mxu0
        %v1834 = vadd.f32 %v1732, %v1833
        %v1835 = vpop.f32.mrf.mxu0
        %1836 = vmatprep.mubr.f32.mxu0 0.0
        %1837 = vmatmul.mubr.f32.gmra.mxu0 %v398
        %v1838 = vpop.f32.mrf.mxu0
        %v1839 = vadd.f32 %v1732, %v1838
        %v1840 = vpop.f32.mrf.mxu0
        %1841 = vmatprep.mubr.f32.mxu0 0.0
        %1842 = vmatmul.mubr.f32.gmra.mxu0 %v401
        %v1843 = vpop.f32.mrf.mxu0
        %v1844 = vadd.f32 %v1732, %v1843
        %v1845 = vpop.f32.mrf.mxu0
        %1846 = vmatprep.mubr.f32.mxu0 0.0
        %1847 = vmatmul.mubr.f32.gmra.mxu0 %v404
        %v1848 = vpop.f32.mrf.mxu0
        %v1849 = vadd.f32 %v1732, %v1848
        %v1850 = vpop.f32.mrf.mxu0
        %1851 = vmatprep.mubr.f32.mxu0 0.0
        %1852 = vmatmul.mubr.f32.gmra.mxu0 %v407
        %v1853 = vpop.f32.mrf.mxu0
        %v1854 = vadd.f32 %v1732, %v1853
        %v1855 = vpop.f32.mrf.mxu0
        %1856 = vmatprep.mubr.f32.mxu0 0.0
        %1857 = vmatmul.mubr.f32.gmra.mxu0 %v410
        %v1858 = vpop.f32.mrf.mxu0
        %v1859 = vadd.f32 %v1732, %v1858
        %v1860 = vpop.f32.mrf.mxu0
        %1861 = vmatprep.mubr.f32.mxu0 0.0
        %1862 = vmatmul.mubr.f32.gmra.mxu0 %v413
        %v1863 = vpop.f32.mrf.mxu0
        %v1864 = vadd.f32 %v1732, %v1863
        %v1865 = vpop.f32.mrf.mxu0
        %1866 = vmatprep.mubr.f32.mxu0 0.0
        %1867 = vmatmul.mubr.f32.gmra.mxu0 %v416
        %v1868 = vpop.f32.mrf.mxu0
        %v1869 = vadd.f32 %v1732, %v1868
        %v1870 = vpop.f32.mrf.mxu0
        %1871 = vmatprep.mubr.f32.mxu0 0.0
        %1872 = vmatmul.mubr.f32.gmra.mxu0 %v419
        %v1873 = vpop.f32.mrf.mxu0
        %v1874 = vadd.f32 %v1732, %v1873
        %v1875 = vpop.f32.mrf.mxu0
        %1876 = vmatprep.mubr.f32.mxu0 0.0
        %1877 = vmatmul.mubr.f32.gmra.mxu0 %v422
        %v1878 = vpop.f32.mrf.mxu0
        %v1879 = vadd.f32 %v1732, %v1878
        %v1880 = vpop.f32.mrf.mxu0
        %1881 = vmatprep.mubr.f32.mxu0 0.0
        %1882 = vmatmul.mubr.f32.gmra.mxu0 %v425
        %v1883 = vpop.f32.mrf.mxu0
        %v1884 = vadd.f32 %v1732, %v1883
        %v1885 = vpop.f32.mrf.mxu0
        %1886 = vmatprep.mubr.f32.mxu0 0.0
        %1887 = vmatmul.mubr.f32.gmra.mxu0 %v428
        %v1888 = vpop.f32.mrf.mxu0
        %v1889 = vadd.f32 %v1732, %v1888
        %v1890 = vpop.f32.mrf.mxu0
        %1891 = vmatprep.mubr.f32.mxu0 0.0
        %1892 = vmatmul.mubr.f32.gmra.mxu0 %v431
        %v1893 = vpop.f32.mrf.mxu0
        %v1894 = vadd.f32 %v1732, %v1893
        %v1895 = vpop.f32.mrf.mxu0
        %1896 = vmatprep.mubr.f32.mxu0 0.0
        %1897 = vmatmul.mubr.f32.gmra.mxu0 %v434
        %v1898 = vpop.f32.mrf.mxu0
        %v1899 = vadd.f32 %v1732, %v1898
        %v1900 = vpop.f32.mrf.mxu0
        %1901 = vmatprep.mubr.f32.mxu0 0.0
        %1902 = vmatmul.mubr.f32.gmra.mxu0 %v437
        %v1903 = vpop.f32.mrf.mxu0
        %v1904 = vadd.f32 %v1732, %v1903
        %v1905 = vpop.f32.mrf.mxu0
        %1906 = vmatprep.mubr.f32.mxu0 0.0
        %1907 = vmatmul.mubr.f32.gmra.mxu0 %v440
        %v1908 = vpop.f32.mrf.mxu0
        %v1909 = vadd.f32 %v1732, %v1908
        %v1910 = vpop.f32.mrf.mxu0
        %1911 = vmatprep.mubr.f32.mxu0 0.0
        %1912 = vmatmul.mubr.f32.gmra.mxu0 %v443
        %v1913 = vpop.f32.mrf.mxu0
        %v1914 = vadd.f32 %v1732, %v1913
        %v1915 = vpop.f32.mrf.mxu0
        %1916 = vmatprep.mubr.f32.mxu0 0.0
        %1917 = vmatmul.mubr.f32.gmra.mxu0 %v446
        %v1918 = vpop.f32.mrf.mxu0
        %v1919 = vadd.f32 %v1732, %v1918
        %v1920 = vpop.f32.mrf.mxu0
        %1921 = vmatprep.mubr.f32.mxu0 0.0
        %1922 = vmatmul.mubr.f32.gmra.mxu0 %v449
        %v1923 = vpop.f32.mrf.mxu0
        %v1924 = vadd.f32 %v1732, %v1923
        %v1925 = vpop.f32.mrf.mxu0
        %1926 = vmatprep.mubr.f32.mxu0 0.0
        %1927 = vmatmul.mubr.f32.gmra.mxu0 %v452
        %v1928 = vpop.f32.mrf.mxu0
        %v1929 = vadd.f32 %v1732, %v1928
        %v1930 = vpop.f32.mrf.mxu0
        %1931 = vmatprep.mubr.f32.mxu0 0.0
        %1932 = vmatmul.mubr.f32.gmra.mxu0 %v455
        %v1933 = vpop.f32.mrf.mxu0
        %v1934 = vadd.f32 %v1732, %v1933
        %v1935 = vpop.f32.mrf.mxu0
        %1936 = vmatprep.mubr.f32.mxu0 0.0
        %1937 = vmatmul.mubr.f32.gmra.mxu0 %v458
        %v1938 = vpop.f32.mrf.mxu0
        %v1939 = vadd.f32 %v1732, %v1938
        %v1940 = vpop.f32.mrf.mxu0
        %1941 = vmatprep.mubr.f32.mxu0 0.0
        %1942 = vmatmul.mubr.f32.gmra.mxu0 %v461
        %v1943 = vpop.f32.mrf.mxu0
        %v1944 = vadd.f32 %v1732, %v1943
        %v1945 = vpop.f32.mrf.mxu0
        %1946 = vmatprep.mubr.f32.mxu0 0.0
        %1947 = vmatmul.mubr.f32.gmra.mxu0 %v464
        %v1948 = vpop.f32.mrf.mxu0
        %v1949 = vadd.f32 %v1732, %v1948
        %v1950 = vpop.f32.mrf.mxu0
        %1951 = vmatprep.mubr.f32.mxu0 0.0
        %1952 = vmatmul.mubr.f32.gmra.mxu0 %v467
        %v1953 = vpop.f32.mrf.mxu0
        %v1954 = vadd.f32 %v1732, %v1953
        %v1955 = vpop.f32.mrf.mxu0
        %1956 = vmatprep.mubr.f32.mxu0 0.0
        %1957 = vmatmul.mubr.f32.gmra.mxu0 %v470
        %v1958 = vpop.f32.mrf.mxu0
        %v1959 = vadd.f32 %v1732, %v1958
        %v1960 = vpop.f32.mrf.mxu0
        %1961 = vdwg.mxu0
        %v1962 = vlaneseq
        %v1963 = vand.u32 %v1962, 127
        %vm1964 = vcmp.eq.s32.totalorder %v1963, 3
        %v1965 = vsel %vm1964, 1, 0
        %v1966 = vcvt.s32.f32 %v1965
        %v1967 = vmul.f32 %v1694, %v1966
        %v1968 = vmul.f32 %v1695, %v1966
        %v1969 = vmul.f32 %v1696, %v1966
        %v1970 = vmul.f32 %v1697, %v1966
        %v1971 = vmul.f32 %v1698, %v1966
        %v1972 = vmul.f32 %v1699, %v1966
        %v1973 = vmul.f32 %v1700, %v1966
        %v1974 = vmul.f32 %v1701, %v1966
        %v1975 = vmul.f32 %v1702, %v1966
        %v1976 = vmul.f32 %v1703, %v1966
        %v1977 = vmul.f32 %v1704, %v1966
        %v1978 = vmul.f32 %v1705, %v1966
        %v1979 = vmul.f32 %v1706, %v1966
        %v1980 = vmul.f32 %v1707, %v1966
        %v1981 = vmul.f32 %v1708, %v1966
        %v1982 = vmul.f32 %v1709, %v1966
        %v1983 = vmul.f32 %v1710, %v1966
        %v1984 = vmul.f32 %v1711, %v1966
        %v1985 = vmul.f32 %v1712, %v1966
        %v1986 = vmul.f32 %v1713, %v1966
        %v1987 = vmul.f32 %v1714, %v1966
        %v1988 = vmul.f32 %v1715, %v1966
        %v1989 = vmul.f32 %v1716, %v1966
        %v1990 = vmul.f32 %v1717, %v1966
        %v1991 = vmul.f32 %v1718, %v1966
        %v1992 = vmul.f32 %v1719, %v1966
        %v1993 = vmul.f32 %v1720, %v1966
        %v1994 = vmul.f32 %v1721, %v1966
        %v1995 = vmul.f32 %v1722, %v1966
        %v1996 = vmul.f32 %v1723, %v1966
        %v1997 = vmul.f32 %v1724, %v1966
        %v1998 = vmul.f32 %v1725, %v1966
        %v1999 = vadd.f32 %v1804, %v1967
        %v2000 = vadd.f32 %v1809, %v1968
        %v2001 = vadd.f32 %v1814, %v1969
        %v2002 = vadd.f32 %v1819, %v1970
        %v2003 = vadd.f32 %v1824, %v1971
        %v2004 = vadd.f32 %v1829, %v1972
        %v2005 = vadd.f32 %v1834, %v1973
        %v2006 = vadd.f32 %v1839, %v1974
        %v2007 = vadd.f32 %v1844, %v1975
        %v2008 = vadd.f32 %v1849, %v1976
        %v2009 = vadd.f32 %v1854, %v1977
        %v2010 = vadd.f32 %v1859, %v1978
        %v2011 = vadd.f32 %v1864, %v1979
        %v2012 = vadd.f32 %v1869, %v1980
        %v2013 = vadd.f32 %v1874, %v1981
        %v2014 = vadd.f32 %v1879, %v1982
        %v2015 = vadd.f32 %v1884, %v1983
        %v2016 = vadd.f32 %v1889, %v1984
        %v2017 = vadd.f32 %v1894, %v1985
        %v2018 = vadd.f32 %v1899, %v1986
        %v2019 = vadd.f32 %v1904, %v1987
        %v2020 = vadd.f32 %v1909, %v1988
        %v2021 = vadd.f32 %v1914, %v1989
        %v2022 = vadd.f32 %v1919, %v1990
        %v2023 = vadd.f32 %v1924, %v1991
        %v2024 = vadd.f32 %v1929, %v1992
        %v2025 = vadd.f32 %v1934, %v1993
        %v2026 = vadd.f32 %v1939, %v1994
        %v2027 = vadd.f32 %v1944, %v1995
        %v2028 = vadd.f32 %v1949, %v1996
        %v2029 = vadd.f32 %v1954, %v1997
        %v2030 = vadd.f32 %v1959, %v1998
        %2031 = vst [vmem:[%s327] sm:$0xff] %v1999
        %2032 = vst [vmem:[%s327 + $0x8] sm:$0xff] %v2000
        %2033 = vst [vmem:[%s327 + $0x10] sm:$0xff] %v2001
        %2034 = vst [vmem:[%s327 + $0x18] sm:$0xff] %v2002
        %2035 = vst [vmem:[%s327 + $0x20] sm:$0xff] %v2003
        %2036 = vst [vmem:[%s327 + $0x28] sm:$0xff] %v2004
        %2037 = vst [vmem:[%s327 + $0x30] sm:$0xff] %v2005
        %2038 = vst [vmem:[%s327 + $0x38] sm:$0xff] %v2006
        %2039 = vst [vmem:[%s327 + $0x40] sm:$0xff] %v2007
        %2040 = vst [vmem:[%s327 + $0x48] sm:$0xff] %v2008
        %2041 = vst [vmem:[%s327 + $0x50] sm:$0xff] %v2009
        %2042 = vst [vmem:[%s327 + $0x58] sm:$0xff] %v2010
        %2043 = vst [vmem:[%s327 + $0x60] sm:$0xff] %v2011
        %2044 = vst [vmem:[%s327 + $0x68] sm:$0xff] %v2012
        %2045 = vst [vmem:[%s327 + $0x70] sm:$0xff] %v2013
        %2046 = vst [vmem:[%s327 + $0x78] sm:$0xff] %v2014
        %2047 = vst [vmem:[%s327 + $0x80] sm:$0xff] %v2015
        %2048 = vst [vmem:[%s327 + $0x88] sm:$0xff] %v2016
        %2049 = vst [vmem:[%s327 + $0x90] sm:$0xff] %v2017
        %2050 = vst [vmem:[%s327 + $0x98] sm:$0xff] %v2018
        %2051 = vst [vmem:[%s327 + $0xa0] sm:$0xff] %v2019
        %2052 = vst [vmem:[%s327 + $0xa8] sm:$0xff] %v2020
        %2053 = vst [vmem:[%s327 + $0xb0] sm:$0xff] %v2021
        %2054 = vst [vmem:[%s327 + $0xb8] sm:$0xff] %v2022
        %2055 = vst [vmem:[%s327 + $0xc0] sm:$0xff] %v2023
        %2056 = vst [vmem:[%s327 + $0xc8] sm:$0xff] %v2024
        %2057 = vst [vmem:[%s327 + $0xd0] sm:$0xff] %v2025
        %2058 = vst [vmem:[%s327 + $0xd8] sm:$0xff] %v2026
        %2059 = vst [vmem:[%s327 + $0xe0] sm:$0xff] %v2027
        %2060 = vst [vmem:[%s327 + $0xe8] sm:$0xff] %v2028
        %2061 = vst [vmem:[%s327 + $0xf0] sm:$0xff] %v2029
        %2062 = vst [vmem:[%s327 + $0xf8] sm:$0xff] %v2030
        %s2063 = sand.u32 %s226, 1
        %s2064 = scalar_lea.sflag [#allocation4], %s2063
        %s2065 = sand.u32 %s226, 1
        %s2066 = smul.addr %s2065, 256
        %s2067 = scalar_lea.vmem [#allocation3], %s2066
        // Predicated region
        $region57: #{tpu_custom_call.1} parent=55 // pred_check
          %p2068 = pneg %p236
        $region58: #{tpu_custom_call.1} parent=55 // pred_check_branch
          %2070 = sbr.rel (%p2068) target = $region60
        $region59: #{tpu_custom_call.1} parent=55 // pred_region
          %s2071 = smul.u32 32, %s24
          %s2073 = ssub.s32 4096, 4096
          %2074 = vsyncadd %s2064, %s2073
          %s2075 = smul.addr %s2071, 128
          %s2076 = scalar_lea.hbm %s9, %s2075
          %s2077 = sshll.u32 %s2067, 4
          %s2078 = int_to_ptr.vmem [resolvable:$true] %s2077
          %2083 = dma.vmem_to_hbm [thread:$0]  %s2078, 4096, %s2076, %s2064, 128, 128, 8
        $region60: #{tpu_custom_call.1} parent=55 // pred_fallthru
          _
      $region56: #{tpu_custom_call.1} parent=5 // pred_fallthru
        _
      %p2084 = scmp.le.s32.totalorder 2, %s19
      // Predicated region
      $region61: #{tpu_custom_call.1} parent=5 // pred_check
        %p2085 = pneg %p2084
      $region62: #{tpu_custom_call.1} parent=5 // pred_check_branch
        %2087 = sbr.rel (%p2085) target = $region64
      $region63: #{tpu_custom_call.1} parent=5 // pred_region
        %s2088 = ssub.s32 %s19, 2
        // Predicated region
        $region65: #{tpu_custom_call.1} parent=63 // pred_check
          %p2089 = pneg %p242
        $region66: #{tpu_custom_call.1} parent=63 // pred_check_branch
          %2091 = sbr.rel (%p2089) target = $region68
        $region67: #{tpu_custom_call.1} parent=63 // pred_region
          %s2092 = sand.u32 %s227, 1
          %s2093 = scalar_lea.sflag [#allocation4], %s2092
          %s2094 = sand.u32 %s227, 1
          %s2095 = smul.addr %s2094, 256
          %s2096 = scalar_lea.vmem [#allocation3], %s2095
          %2097 = dma.done %s2093, 4096
        $region68: #{tpu_custom_call.1} parent=63 // pred_fallthru
          _
      $region64: #{tpu_custom_call.1} parent=5 // pred_fallthru
        _
    $region6: #{tpu_custom_call.1} parent=1 // loop_footer
      %s23 = sadd.s32 1, %s19
    $region7: #{tpu_custom_call.1} parent=1 // loop_footer_branch
      %18 = sbr.rel target = $region3
    $region8: #{tpu_custom_call.1} parent=1 // loop_exit
      _
    %2098 = vsyncpa [#allocation4], 1
    %s2099 = scalar_lea.sflag [#allocation4], 1
    %2100 = vsyncpa %s2099, 1

</llo_original>
